<compile_context>
chip_gen: v6e
topology: v6e:2x2x1
jax: 0.10.0
libtpu: 0.0.40
codegen_flags: <defaults>
</compile_context>

<pallas_src>
import functools

import jax
import jax.numpy as jnp
from jax.experimental import pallas as pl
from jax.experimental.pallas import tpu as pltpu

LANE = 128


def _round_up(x, m):
    return (x + m - 1) // m * m


def _complex_conv_kernel(x_ref, w_ref, o_ref, col_ref, *,
                         KH, KW, OH, OW, stride):
    """One (batch, cout-tile) grid step.

    x_ref  : (1, Hp, Wp, Cp)       padded NHWC activations (VMEM)
    w_ref  : (KH*KW*Cp, TCO)       flattened, lane-dense HWIO weight tile
    o_ref  : (1, OH*OW, TCO)       lane-dense output tile
    col_ref: (OH*OW, KH*KW*Cp)     im2col scratch, persists across cout tiles
    """
    Cp = x_ref.shape[-1]
    M = OH * OW

    # Build the im2col buffer only once per batch element; the inner
    # cout-tile grid axis (axis 1, "arbitrary") reuses it.
    @pl.when(pl.program_id(1) == 0)
    def _build_col():
        for kh in range(KH):            # KH, KW are small static ints
            for kw in range(KW):
                tap = kh * KW + kw
                if stride == 1:
                    slab = x_ref[0, kh:kh + OH, kw:kw + OW, :]
                else:
                    # strided window read straight from VMEM
                    slab = x_ref[0, pl.ds(kh, OH, stride),
                                 pl.ds(kw, OW, stride), :]
                # (OH, OW, Cp) -> (OH*OW, Cp); layout-free when OW % 8 == 0.
                col_ref[:, tap * Cp:(tap + 1) * Cp] = slab.reshape(M, Cp)

    # Single MXU matmul with a deep K: (M, KH*KW*Cp) @ (KH*KW*Cp, TCO).
    o_ref[0] = jnp.dot(col_ref[...], w_ref[...],
                       preferred_element_type=jnp.float32).astype(o_ref.dtype)


def new_complex_conv(x, weightr, weighti, *, stride=1, padding=0,
                     compute_dtype=jnp.float32, cout_tile=LANE):
    """x: (N, 2*Cin, H, W); weightr/weighti: (Cout, Cin, KH, KW).

    Returns (N, 2*Cout, OH, OW) float32, matching the PyTorch module.
    `compute_dtype=jnp.bfloat16` trades a little accuracy for ~2x MXU/DMA
    throughput on v6e/v7x (accumulation stays f32).
    """
    N, C2, H, W = x.shape
    Cin = C2 // 2
    Cout, Cin_w, KH, KW = weightr.shape
    assert Cin_w == Cin, (Cin_w, Cin)
    Cin2, Cout2 = 2 * Cin, 2 * Cout

    OH = (H + 2 * padding - KH) // stride + 1
    OW = (W + 2 * padding - KW) // stride + 1
    if OH < 1 or OW < 1:
        raise ValueError(f"Empty conv output: OH={OH}, OW={OW}")

    Hp, Wp = H + 2 * padding, W + 2 * padding
    Cp = _round_up(Cin2, LANE)            # lane-padded input channels
    TCO = cout_tile                       # output-channel tile (multiple of 128)
    Cout_p = _round_up(Cout2, TCO)        # lane-padded output channels
    nco = Cout_p // TCO
    M = OH * OW

    # --- combined real/imag weight, flattened to a lane-dense 2D matrix ----
    w_real = jnp.concatenate([weightr, -weighti], axis=1)   # real output chans
    w_imag = jnp.concatenate([weighti, weightr], axis=1)    # imag output chans
    w_comb = jnp.concatenate([w_real, w_imag], axis=0)      # (Cout2, Cin2, KH, KW)
    w_hwio = jnp.transpose(w_comb, (2, 3, 1, 0)).astype(compute_dtype)
    w_hwio = jnp.pad(w_hwio, ((0, 0), (0, 0),
                              (0, Cp - Cin2), (0, Cout_p - Cout2)))
    w2d = w_hwio.reshape(KH * KW * Cp, Cout_p)               # (K, Cout_p)

    # --- activations: NCHW -> NHWC, single pad (spatial + channel) ---------
    x_nhwc = jnp.transpose(x, (0, 2, 3, 1)).astype(compute_dtype)
    x_pad = jnp.pad(x_nhwc, ((0, 0), (padding, padding),
                             (padding, padding), (0, Cp - Cin2)))

    kernel = functools.partial(_complex_conv_kernel,
                               KH=KH, KW=KW, OH=OH, OW=OW, stride=stride)

    out = pl.pallas_call(
        kernel,
        out_shape=jax.ShapeDtypeStruct((N, M, Cout_p), jnp.float32),
        grid=(N, nco),
        in_specs=[
            pl.BlockSpec((1, Hp, Wp, Cp), lambda n, j: (n, 0, 0, 0)),
            pl.BlockSpec((KH * KW * Cp, TCO), lambda n, j: (0, j)),
        ],
        out_specs=pl.BlockSpec((1, M, TCO), lambda n, j: (n, 0, j)),
        scratch_shapes=[pltpu.VMEM((M, KH * KW * Cp), compute_dtype)],
        compiler_params=pltpu.CompilerParams(
            dimension_semantics=("parallel", "arbitrary")),
    )(x_pad, w2d)

    # Strip channel padding, restore spatial dims, back to NCHW.
    out = out[:, :, :Cout2].reshape(N, OH, OW, Cout2)
    return jnp.transpose(out, (0, 3, 1, 2))


def _reference(x, wr, wi, stride, padding):
    """Pure-JAX reference reproducing the PyTorch forward (for verification)."""
    Cin = x.shape[1] // 2
    xr, xi = x[:, :Cin], x[:, Cin:]

    def conv(a, w):
        return jax.lax.conv_general_dilated(
            a, w, (stride, stride), [(padding, padding)] * 2,
            dimension_numbers=("NCHW", "OIHW", "NCHW"))

    real = conv(xr, wr) - conv(xi, wi)
    imag = conv(xi, wr) + conv(xr, wi)
    return jnp.concatenate([real, imag], axis=1)


if __name__ == "__main__":
    # Small deterministic example: batch=2, in_channel=4 (x has 8 channels),
    # out_channel=4, spatial 16x16, kernel 3x3, stride=1, padding=1.
    key = jax.random.PRNGKey(0)
    k_x, k_wr, k_wi = jax.random.split(key, 3)

    N, Cin, Cout, H, W, KH, KW = 2, 4, 4, 16, 16, 3, 3
    stride, padding = 1, 1

    x = jax.random.normal(k_x, (N, 2 * Cin, H, W), dtype=jnp.float32)
    weightr = jax.random.normal(k_wr, (Cout, Cin, KH, KW), dtype=jnp.float32)
    weighti = jax.random.normal(k_wi, (Cout, Cin, KH, KW), dtype=jnp.float32)

    fn = jax.jit(functools.partial(new_complex_conv,
                                   stride=stride, padding=padding))
    out = jax.block_until_ready(fn(x, weightr, weighti))

    ref = _reference(x, weightr, weighti, stride, padding)
    assert out.shape == (N, 2 * Cout, H, W), out.shape
    err = float(jnp.max(jnp.abs(out - ref)))
    assert err < 1e-3, err

    print("KERNEL_OK")
</pallas_src>

<mosaic_0001>
module attributes {stable_mosaic.version = 11 : i64} {
  func.func @_complex_conv_kernel(%arg0: i32, %arg1: i32, %arg2: memref<1x18x18x128xf32, #tpu.memory_space<vmem>>, %arg3: memref<1152x128xf32, #tpu.memory_space<vmem>>, %arg4: memref<1x256x128xf32, #tpu.memory_space<vmem>>, %arg5: memref<256x1152xf32, #tpu.memory_space<vmem>>) attributes {dimension_semantics = [#tpu.dimension_semantics<parallel>, #tpu.dimension_semantics<arbitrary>], iteration_bounds = array<i64: 2, 1>, scalar_prefetch = 0 : i64, scratch_operands = 1 : i64, tpu.core_type = #tpu.core_type<tc>, window_params = [{transform_indices = @transform_0, window_bounds = array<i64: 1, 18, 18, 128>}, {transform_indices = @transform_1, window_bounds = array<i64: 1152, 128>}, {transform_indices = @transform_2, window_bounds = array<i64: 1, 256, 128>}]} {
    %c0_i32 = arith.constant 0 : i32
    %0 = arith.cmpi eq, %arg1, %c0_i32 : i32
    %1 = arith.extui %0 : i1 to i32
    %c0_i32_0 = arith.constant 0 : i32
    %2 = arith.cmpi ne, %1, %c0_i32_0 : i32
    scf.if %2 {
      %c0_7 = arith.constant 0 : index
      %c0_8 = arith.constant 0 : index
      %c0_9 = arith.constant 0 : index
      %c0_10 = arith.constant 0 : index
      %9 = vector.load %arg2[%c0_7, %c0_8, %c0_9, %c0_10] : memref<1x18x18x128xf32, #tpu.memory_space<vmem>>, vector<1x16x16x128xf32>
      %10 = vector.shape_cast %9 : vector<1x16x16x128xf32> to vector<16x16x128xf32>
      %11 = vector.shape_cast %10 : vector<16x16x128xf32> to vector<256x128xf32>
      %c0_11 = arith.constant 0 : index
      %c0_12 = arith.constant 0 : index
      %12 = vector.load %arg5[%c0_11, %c0_12] : memref<256x1152xf32, #tpu.memory_space<vmem>>, vector<256x128xf32>
      tpu.vector_store %arg5[%c0_11, %c0_12], %11 {strides = array<i32>} : memref<256x1152xf32, #tpu.memory_space<vmem>>, vector<256x128xf32>,
      %c0_13 = arith.constant 0 : index
      %c0_14 = arith.constant 0 : index
      %c1 = arith.constant 1 : index
      %c0_15 = arith.constant 0 : index
      %13 = vector.load %arg2[%c0_13, %c0_14, %c1, %c0_15] : memref<1x18x18x128xf32, #tpu.memory_space<vmem>>, vector<1x16x16x128xf32>
      %14 = vector.shape_cast %13 : vector<1x16x16x128xf32> to vector<16x16x128xf32>
      %15 = vector.shape_cast %14 : vector<16x16x128xf32> to vector<256x128xf32>
      %c0_16 = arith.constant 0 : index
      %c128 = arith.constant 128 : index
      %16 = vector.load %arg5[%c0_16, %c128] : memref<256x1152xf32, #tpu.memory_space<vmem>>, vector<256x128xf32>
      tpu.vector_store %arg5[%c0_16, %c128], %15 {strides = array<i32>} : memref<256x1152xf32, #tpu.memory_space<vmem>>, vector<256x128xf32>,
      %c0_17 = arith.constant 0 : index
      %c0_18 = arith.constant 0 : index
      %c2 = arith.constant 2 : index
      %c0_19 = arith.constant 0 : index
      %17 = vector.load %arg2[%c0_17, %c0_18, %c2, %c0_19] : memref<1x18x18x128xf32, #tpu.memory_space<vmem>>, vector<1x16x16x128xf32>
      %18 = vector.shape_cast %17 : vector<1x16x16x128xf32> to vector<16x16x128xf32>
      %19 = vector.shape_cast %18 : vector<16x16x128xf32> to vector<256x128xf32>
      %c0_20 = arith.constant 0 : index
      %c256 = arith.constant 256 : index
      %20 = vector.load %arg5[%c0_20, %c256] : memref<256x1152xf32, #tpu.memory_space<vmem>>, vector<256x128xf32>
      tpu.vector_store %arg5[%c0_20, %c256], %19 {strides = array<i32>} : memref<256x1152xf32, #tpu.memory_space<vmem>>, vector<256x128xf32>,
      %c0_21 = arith.constant 0 : index
      %c1_22 = arith.constant 1 : index
      %c0_23 = arith.constant 0 : index
      %c0_24 = arith.constant 0 : index
      %21 = vector.load %arg2[%c0_21, %c1_22, %c0_23, %c0_24] : memref<1x18x18x128xf32, #tpu.memory_space<vmem>>, vector<1x16x16x128xf32>
      %22 = vector.shape_cast %21 : vector<1x16x16x128xf32> to vector<16x16x128xf32>
      %23 = vector.shape_cast %22 : vector<16x16x128xf32> to vector<256x128xf32>
      %c0_25 = arith.constant 0 : index
      %c384 = arith.constant 384 : index
      %24 = vector.load %arg5[%c0_25, %c384] : memref<256x1152xf32, #tpu.memory_space<vmem>>, vector<256x128xf32>
      tpu.vector_store %arg5[%c0_25, %c384], %23 {strides = array<i32>} : memref<256x1152xf32, #tpu.memory_space<vmem>>, vector<256x128xf32>,
      %c0_26 = arith.constant 0 : index
      %c1_27 = arith.constant 1 : index
      %c1_28 = arith.constant 1 : index
      %c0_29 = arith.constant 0 : index
      %25 = vector.load %arg2[%c0_26, %c1_27, %c1_28, %c0_29] : memref<1x18x18x128xf32, #tpu.memory_space<vmem>>, vector<1x16x16x128xf32>
      %26 = vector.shape_cast %25 : vector<1x16x16x128xf32> to vector<16x16x128xf32>
      %27 = vector.shape_cast %26 : vector<16x16x128xf32> to vector<256x128xf32>
      %c0_30 = arith.constant 0 : index
      %c512 = arith.constant 512 : index
      %28 = vector.load %arg5[%c0_30, %c512] : memref<256x1152xf32, #tpu.memory_space<vmem>>, vector<256x128xf32>
      tpu.vector_store %arg5[%c0_30, %c512], %27 {strides = array<i32>} : memref<256x1152xf32, #tpu.memory_space<vmem>>, vector<256x128xf32>,
      %c0_31 = arith.constant 0 : index
      %c1_32 = arith.constant 1 : index
      %c2_33 = arith.constant 2 : index
      %c0_34 = arith.constant 0 : index
      %29 = vector.load %arg2[%c0_31, %c1_32, %c2_33, %c0_34] : memref<1x18x18x128xf32, #tpu.memory_space<vmem>>, vector<1x16x16x128xf32>
      %30 = vector.shape_cast %29 : vector<1x16x16x128xf32> to vector<16x16x128xf32>
      %31 = vector.shape_cast %30 : vector<16x16x128xf32> to vector<256x128xf32>
      %c0_35 = arith.constant 0 : index
      %c640 = arith.constant 640 : index
      %32 = vector.load %arg5[%c0_35, %c640] : memref<256x1152xf32, #tpu.memory_space<vmem>>, vector<256x128xf32>
      tpu.vector_store %arg5[%c0_35, %c640], %31 {strides = array<i32>} : memref<256x1152xf32, #tpu.memory_space<vmem>>, vector<256x128xf32>,
      %c0_36 = arith.constant 0 : index
      %c2_37 = arith.constant 2 : index
      %c0_38 = arith.constant 0 : index
      %c0_39 = arith.constant 0 : index
      %33 = vector.load %arg2[%c0_36, %c2_37, %c0_38, %c0_39] : memref<1x18x18x128xf32, #tpu.memory_space<vmem>>, vector<1x16x16x128xf32>
      %34 = vector.shape_cast %33 : vector<1x16x16x128xf32> to vector<16x16x128xf32>
      %35 = vector.shape_cast %34 : vector<16x16x128xf32> to vector<256x128xf32>
      %c0_40 = arith.constant 0 : index
      %c768 = arith.constant 768 : index
      %36 = vector.load %arg5[%c0_40, %c768] : memref<256x1152xf32, #tpu.memory_space<vmem>>, vector<256x128xf32>
      tpu.vector_store %arg5[%c0_40, %c768], %35 {strides = array<i32>} : memref<256x1152xf32, #tpu.memory_space<vmem>>, vector<256x128xf32>,
      %c0_41 = arith.constant 0 : index
      %c2_42 = arith.constant 2 : index
      %c1_43 = arith.constant 1 : index
      %c0_44 = arith.constant 0 : index
      %37 = vector.load %arg2[%c0_41, %c2_42, %c1_43, %c0_44] : memref<1x18x18x128xf32, #tpu.memory_space<vmem>>, vector<1x16x16x128xf32>
      %38 = vector.shape_cast %37 : vector<1x16x16x128xf32> to vector<16x16x128xf32>
      %39 = vector.shape_cast %38 : vector<16x16x128xf32> to vector<256x128xf32>
      %c0_45 = arith.constant 0 : index
      %c896 = arith.constant 896 : index
      %40 = vector.load %arg5[%c0_45, %c896] : memref<256x1152xf32, #tpu.memory_space<vmem>>, vector<256x128xf32>
      tpu.vector_store %arg5[%c0_45, %c896], %39 {strides = array<i32>} : memref<256x1152xf32, #tpu.memory_space<vmem>>, vector<256x128xf32>,
      %c0_46 = arith.constant 0 : index
      %c2_47 = arith.constant 2 : index
      %c2_48 = arith.constant 2 : index
      %c0_49 = arith.constant 0 : index
      %41 = vector.load %arg2[%c0_46, %c2_47, %c2_48, %c0_49] : memref<1x18x18x128xf32, #tpu.memory_space<vmem>>, vector<1x16x16x128xf32>
      %42 = vector.shape_cast %41 : vector<1x16x16x128xf32> to vector<16x16x128xf32>
      %43 = vector.shape_cast %42 : vector<16x16x128xf32> to vector<256x128xf32>
      %c0_50 = arith.constant 0 : index
      %c1024 = arith.constant 1024 : index
      %44 = vector.load %arg5[%c0_50, %c1024] : memref<256x1152xf32, #tpu.memory_space<vmem>>, vector<256x128xf32>
      tpu.vector_store %arg5[%c0_50, %c1024], %43 {strides = array<i32>} : memref<256x1152xf32, #tpu.memory_space<vmem>>, vector<256x128xf32>,
    } else {
    }
    %c0 = arith.constant 0 : index
    %c0_1 = arith.constant 0 : index
    %3 = vector.load %arg5[%c0, %c0_1] : memref<256x1152xf32, #tpu.memory_space<vmem>>, vector<256x1152xf32>
    %c0_2 = arith.constant 0 : index
    %c0_3 = arith.constant 0 : index
    %4 = vector.load %arg3[%c0_2, %c0_3] : memref<1152x128xf32, #tpu.memory_space<vmem>>, vector<1152x128xf32>
    %cst = arith.constant dense<0.000000e+00> : vector<256x128xf32>
    %5 = tpu.matmul %3, %4, %cst {dimension_numbers = #tpu.dot_dimension_numbers<[1], [0], [0], [1], [0, 0, 1, 1], [], []>} : vector<256x1152xf32>, vector<1152x128xf32>, vector<256x128xf32> -> vector<256x128xf32>
    %c0_4 = arith.constant 0 : index
    %c0_5 = arith.constant 0 : index
    %c0_6 = arith.constant 0 : index
    %6 = vector.load %arg4[%c0_4, %c0_5, %c0_6] : memref<1x256x128xf32, #tpu.memory_space<vmem>>, vector<1x256x128xf32>
    %7 = vector.shape_cast %6 : vector<1x256x128xf32> to vector<256x128xf32>
    %8 = vector.shape_cast %5 : vector<256x128xf32> to vector<1x256x128xf32>
    tpu.vector_store %arg4[%c0_4, %c0_5, %c0_6], %8 {strides = array<i32>} : memref<1x256x128xf32, #tpu.memory_space<vmem>>, vector<1x256x128xf32>,
    return
  }
  func.func @transform_0(%arg0: i32, %arg1: i32) -> (i32, i32, i32, i32) {
    %c0_i32 = arith.constant 0 : i32
    %c0_i32_0 = arith.constant 0 : i32
    %c0_i32_1 = arith.constant 0 : i32
    %c0_i32_2 = arith.constant 0 : i32
    return %arg0, %c0_i32, %c0_i32_0, %c0_i32_1 : i32, i32, i32, i32
  }
  func.func @transform_1(%arg0: i32, %arg1: i32) -> (i32, i32) {
    %c0_i32 = arith.constant 0 : i32
    %c0_i32_0 = arith.constant 0 : i32
    return %c0_i32, %arg1 : i32, i32
  }
  func.func @transform_2(%arg0: i32, %arg1: i32) -> (i32, i32, i32) {
    %c0_i32 = arith.constant 0 : i32
    %c0_i32_0 = arith.constant 0 : i32
    return %arg0, %c0_i32, %arg1 : i32, i32, i32
  }
}

</mosaic_0001>

<llo_original>
// kernel: neg.1
$region0: #{neg.1}
  #allocation2 [shape = 's32[1]{0}', space=sflag, size = 0x4, scoped, tag = 'scoped memory for neg.1']
  %s0 = inlined_call_operand.hbm [shape: f32[4,4,3,3], index: 0, kind: input, shape index: {}]
  %s1 = inlined_call_operand.vmem [shape: f32[4,4,3,3], index: 1, kind: output, shape index: {}]
  $region1: #{neg.1} parent=0
    #allocation0 [shape = 'u8[18432]{0}', space=vmem, size = 0x4800, scoped, tag = 'operand span for operand 0']
    #allocation1 [shape = 's32[1]{0}', space=sflag, size = 0x4, scoped, tag = 'scoped memory for neg.1']
    %2 = vsyncpa [#allocation1], 0
    %s4 = ssub.s32 576, 576
    %5 = vsyncadd [#allocation1], %s4
    %s6 = sshll.u32 [#allocation0], 4
    %s7 = int_to_ptr.vmem [resolvable:$true] %s6
    %12 = dma.hbm_to_vmem [thread:$0]  %s0, 576, %s7, [#allocation1], 64, 64, 4
    %13 = dma.done [#allocation1], 576
    %v14 = vld [vmem:[#allocation0] sm:$0xf]
    %15 = xla_tuple %v14
    %16 = xla_tuple %15
    %v17 = vxor.u32 %v14, 2147483648
    %18 = xla_tuple %v17
    %19 = vst [vmem:[%s1] sm:$0xf] %v17
    %s20 = scalar_lea.vmem [#allocation0], 12
    %v21 = vld [vmem:[%s20] sm:$0xf]
    %22 = xla_tuple %v21
    %23 = xla_tuple %22
    %v24 = vxor.u32 %v21, 2147483648
    %25 = xla_tuple %v24
    %s26 = scalar_lea.vmem %s1, 12
    %27 = vst [vmem:[%s26] sm:$0xf] %v24
    %s28 = scalar_lea.vmem [#allocation0], 24
    %v29 = vld [vmem:[%s28] sm:$0xf]
    %30 = xla_tuple %v29
    %31 = xla_tuple %30
    %v32 = vxor.u32 %v29, 2147483648
    %33 = xla_tuple %v32
    %s34 = scalar_lea.vmem %s1, 24
    %35 = vst [vmem:[%s34] sm:$0xf] %v32
    %s36 = scalar_lea.vmem [#allocation0], 4
    %v37 = vld [vmem:[%s36] sm:$0xf]
    %38 = xla_tuple %v37
    %39 = xla_tuple %38
    %v40 = vxor.u32 %v37, 2147483648
    %41 = xla_tuple %v40
    %s42 = scalar_lea.vmem %s1, 4
    %43 = vst [vmem:[%s42] sm:$0xf] %v40
    %s44 = scalar_lea.vmem [#allocation0], 16
    %v45 = vld [vmem:[%s44] sm:$0xf]
    %46 = xla_tuple %v45
    %47 = xla_tuple %46
    %v48 = vxor.u32 %v45, 2147483648
    %49 = xla_tuple %v48
    %s50 = scalar_lea.vmem %s1, 16
    %51 = vst [vmem:[%s50] sm:$0xf] %v48
    %s52 = scalar_lea.vmem [#allocation0], 28
    %v53 = vld [vmem:[%s52] sm:$0xf]
    %54 = xla_tuple %v53
    %55 = xla_tuple %54
    %v56 = vxor.u32 %v53, 2147483648
    %57 = xla_tuple %v56
    %s58 = scalar_lea.vmem %s1, 28
    %59 = vst [vmem:[%s58] sm:$0xf] %v56
    %s60 = scalar_lea.vmem [#allocation0], 8
    %v61 = vld [vmem:[%s60] sm:$0xf]
    %62 = xla_tuple %v61
    %63 = xla_tuple %62
    %v64 = vxor.u32 %v61, 2147483648
    %65 = xla_tuple %v64
    %s66 = scalar_lea.vmem %s1, 8
    %67 = vst [vmem:[%s66] sm:$0xf] %v64
    %s68 = scalar_lea.vmem [#allocation0], 20
    %v69 = vld [vmem:[%s68] sm:$0xf]
    %70 = xla_tuple %v69
    %71 = xla_tuple %70
    %v72 = vxor.u32 %v69, 2147483648
    %73 = xla_tuple %v72
    %s74 = scalar_lea.vmem %s1, 20
    %75 = vst [vmem:[%s74] sm:$0xf] %v72
    %s76 = scalar_lea.vmem [#allocation0], 32
    %v77 = vld [vmem:[%s76] sm:$0xf]
    %78 = xla_tuple %v77
    %79 = xla_tuple %78
    %v80 = vxor.u32 %v77, 2147483648
    %81 = xla_tuple %v80
    %s82 = scalar_lea.vmem %s1, 32
    %83 = vst [vmem:[%s82] sm:$0xf] %v80
    %84 = vsyncpa [#allocation1], 1

// kernel: new_complex_conv.1
$region0: #{new_complex_conv.1}
  #allocation0 [shape = 'u32[]', space=smem, size = 0x4, offset = 0x4, fixed_abs, tag = 'smem constant byte address 0x4 - core index']
  #allocation1 [shape = 'u32[144,128]{1,0:T(1,128)}', space=vmem, size = 0x12000, scoped, tag = 'internal scratch']
  #allocation2 [shape = 'f32[256,1152]{1,0:T(8,128)}', space=vmem, size = 0x120000, scoped, tag = 'scratch operand']
  %s0 = inlined_call_operand.vmem [shape: f32[2,18,18,128], index: 0, kind: input, shape index: {}]
  %s1 = inlined_call_operand.vmem [shape: f32[1152,128], index: 1, kind: input, shape index: {}]
  %s2 = inlined_call_operand.vmem [shape: f32[2,256,128], index: 2, kind: output, shape index: {}]
  %s3 = sld [smem:[#allocation0]]
  $region45: #{new_complex_conv.1} parent=0
    _
  %s5 = ssub.s32 1, %s3
  %s6 = scalar_select 0, %s5, %s3
  loop: start=0, step=1, limit=4
  $region2: #{new_complex_conv.1} parent=0 // loop_pre_header
    _
  $region3: #{new_complex_conv.1} parent=0 // loop_header
    %s8 = sphi 0, %s12
    %p9 = scmp.ge.s32.totalorder %s8, 4
    %s15 = sphi 0, %s27
    %s16 = sphi 0, %s23
    %s17 = sphi 0, %s15
    %s18 = sphi 0, %s16
    %s19 = sphi 0, %s17
    %s20 = sphi 0, %s18
    %s30 = sphi 0, %s32
    %s33 = sphi 0, %s30
    %s34 = sphi 0, %s33
    %s50 = sphi 0, %s34
    %s56 = sphi 0, %s58
    %s59 = sphi 0, %s56
    %s60 = sphi 0, %s59
    %s76 = sphi 0, %s60
    %s84 = sphi 0, %s86
    %s87 = sphi 0, %s84
    %s88 = sphi 0, %s87
    %s104 = sphi 0, %s88
  $region4: #{new_complex_conv.1} parent=0 // loop_header_branch
    %11 = sbr.rel (%p9) target = $region8
  $region5: #{new_complex_conv.1} parent=0 // loop_body
    %s13 = ssub.s32 %s8, 1
    %s14 = ssub.s32 %s8, 2
    %s21 = sadd.s32 1, %s16
    %p22 = scmp.ge.s32.totalorder %s21, 1
    %s23 = scalar_select %p22, 0, %s21
    %s24 = sadd.s32 1, %s15
    %s25 = scalar_select %p22, %s24, %s15
    %p26 = scmp.ge.s32.totalorder %s25, 2
    %s27 = scalar_select %p26, 0, %s25
    %s28 = ssub.s32 %s15, %s27
    %p29 = scmp.eq.s32.totalorder %s28, 0
    %s31 = sadd.s32 %s30, 1
    %s32 = scalar_select %p29, %s30, %s31
    %p35 = pneg %p29
    %p36 = scmp.eq.s32.totalorder %s8, 1
    %p37 = por %p35, %p36
    %p38 = scmp.ne.s32.totalorder %s30, %s33
    %p39 = scmp.eq.s32.totalorder %s8, 0
    %p40 = por %p38, %p39
    %p41 = scmp.ne.s32.totalorder %s30, %s33
    %p42 = scmp.eq.s32.totalorder %s13, 1
    %p43 = por %p41, %p42
    %p44 = scmp.ne.s32.totalorder %s33, %s34
    %p45 = scmp.eq.s32.totalorder %s13, 0
    %p46 = por %p44, %p45
    %p47 = scmp.ne.s32.totalorder %s33, %s34
    %p48 = scmp.eq.s32.totalorder %s14, 1
    %p49 = por %p47, %p48
    %p51 = scmp.ne.s32.totalorder %s34, %s50
    %p52 = scmp.eq.s32.totalorder %s14, 0
    %p53 = por %p51, %p52
    %s54 = ssub.s32 %s16, %s23
    %p55 = scmp.eq.s32.totalorder %s54, 0
    %s57 = sadd.s32 %s56, 1
    %s58 = scalar_select %p55, %s56, %s57
    %p61 = pneg %p55
    %p62 = scmp.eq.s32.totalorder %s8, 1
    %p63 = por %p61, %p62
    %p64 = scmp.ne.s32.totalorder %s56, %s59
    %p65 = scmp.eq.s32.totalorder %s8, 0
    %p66 = por %p64, %p65
    %p67 = scmp.ne.s32.totalorder %s56, %s59
    %p68 = scmp.eq.s32.totalorder %s13, 1
    %p69 = por %p67, %p68
    %p70 = scmp.ne.s32.totalorder %s59, %s60
    %p71 = scmp.eq.s32.totalorder %s13, 0
    %p72 = por %p70, %p71
    %p73 = scmp.ne.s32.totalorder %s59, %s60
    %p74 = scmp.eq.s32.totalorder %s14, 1
    %p75 = por %p73, %p74
    %p77 = scmp.ne.s32.totalorder %s60, %s76
    %p78 = scmp.eq.s32.totalorder %s14, 0
    %p79 = por %p77, %p78
    %s80 = ssub.s32 %s15, %s27
    %s81 = ssub.s32 %s16, %s23
    %s82 = sor.u32 %s80, %s81
    %p83 = scmp.eq.s32.totalorder %s82, 0
    %s85 = sadd.s32 %s84, 1
    %s86 = scalar_select %p83, %s84, %s85
    %p89 = pneg %p83
    %p90 = scmp.eq.s32.totalorder %s8, 1
    %p91 = por %p89, %p90
    %p92 = scmp.ne.s32.totalorder %s84, %s87
    %p93 = scmp.eq.s32.totalorder %s8, 0
    %p94 = por %p92, %p93
    %p95 = scmp.ne.s32.totalorder %s84, %s87
    %p96 = scmp.eq.s32.totalorder %s13, 1
    %p97 = por %p95, %p96
    %p98 = scmp.ne.s32.totalorder %s87, %s88
    %p99 = scmp.eq.s32.totalorder %s13, 0
    %p100 = por %p98, %p99
    %p101 = scmp.ne.s32.totalorder %s87, %s88
    %p102 = scmp.eq.s32.totalorder %s14, 1
    %p103 = por %p101, %p102
    %p105 = scmp.ne.s32.totalorder %s88, %s104
    %p106 = scmp.eq.s32.totalorder %s14, 0
    %p107 = por %p105, %p106
    %p108 = scmp.le.s32.totalorder 1, %s8
    %p109 = scmp.lt.s32.totalorder %s8, 3
    %p110 = pnand %p108, %p109
    %p111 = pneg %p110
    // Predicated region
    $region9: #{new_complex_conv.1} parent=5 // pred_check
      _
    $region10: #{new_complex_conv.1} parent=5 // pred_check_branch
      %113 = sbr.rel (%p110) target = $region12
    $region11: #{new_complex_conv.1} parent=5 // pred_region
      %s114 = ssub.s32 %s8, 1
      // Predicated region
      $region13: #{new_complex_conv.1} parent=11 // pred_check
        %p115 = pneg %p72
      $region14: #{new_complex_conv.1} parent=11 // pred_check_branch
        %117 = sbr.rel (%p115) target = $region16
      $region15: #{new_complex_conv.1} parent=11 // pred_region
        %p118 = scmp.lt.s32.totalorder %s18, 0
        %s119 = scalar_select %p118, %s18, 0
        %s120 = smul.addr %s119, 8
        %s121 = scalar_lea.vmem %s1, %s120
      $region16: #{new_complex_conv.1} parent=11 // pred_fallthru
        _
    $region12: #{new_complex_conv.1} parent=5 // pred_fallthru
      _
    %p122 = scmp.lt.s32.totalorder %s8, 2
    // Predicated region
    $region17: #{new_complex_conv.1} parent=5 // pred_check
      %p123 = pneg %p122
    $region18: #{new_complex_conv.1} parent=5 // pred_check_branch
      %125 = sbr.rel (%p123) target = $region20
    $region19: #{new_complex_conv.1} parent=5 // pred_region
      // Predicated region
      $region21: #{new_complex_conv.1} parent=19 // pred_check
        %p126 = pneg %p40
      $region22: #{new_complex_conv.1} parent=19 // pred_check_branch
        %128 = sbr.rel (%p126) target = $region24
      $region23: #{new_complex_conv.1} parent=19 // pred_region
        %p129 = scmp.lt.s32.totalorder %s15, 1
        %s130 = scalar_select %p129, %s15, 1
        %s131 = smul.addr %s130, 54
        %s132 = smul.addr %s131, 8
        %s133 = scalar_lea.vmem %s0, %s132
      $region24: #{new_complex_conv.1} parent=19 // pred_fallthru
        _
    $region20: #{new_complex_conv.1} parent=5 // pred_fallthru
      _
    %p134 = scmp.le.s32.totalorder 1, %s8
    %p135 = scmp.lt.s32.totalorder %s8, 3
    %p136 = pnand %p134, %p135
    %p137 = pneg %p136
    // Predicated region
    $region25: #{new_complex_conv.1} parent=5 // pred_check
      _
    $region26: #{new_complex_conv.1} parent=5 // pred_check_branch
      %139 = sbr.rel (%p136) target = $region28
    $region27: #{new_complex_conv.1} parent=5 // pred_region
      %s140 = ssub.s32 %s8, 1
      %p141 = scmp.lt.s32.totalorder %s17, 1
      %s142 = scalar_select %p141, %s17, 1
      %s143 = smul.addr %s142, 54
      %s144 = smul.addr %s143, 8
      %s145 = scalar_lea.vmem %s0, %s144
      %p146 = pneg %p46
      %p147 = pneg %p43
      %p148 = scmp.lt.s32.totalorder %s18, 0
      %s149 = scalar_select %p148, %s18, 0
      %s150 = smul.addr %s149, 8
      %s151 = scalar_lea.vmem %s1, %s150
      %p152 = pneg %p72
      %p153 = pneg %p69
      %p154 = pneg %p100
      %p155 = pneg %p97
      %p156 = scmp.lt.s32.totalorder %s17, 1
      %s157 = scalar_select %p156, %s17, 1
      %p158 = scmp.lt.s32.totalorder %s18, 0
      %s159 = scalar_select %p158, %s18, 0
      %s160 = smul.addr %s157, 32
      %s161 = sadd.s32 %s159, %s160
      %s162 = smul.addr %s161, 8
      %s163 = scalar_lea.vmem %s2, %s162
      %p164 = scmp.lt.s32.totalorder %s17, 1
      %s165 = scalar_select %p164, %s17, 1
      %s166 = smul.addr %s165, 54
      %s167 = smul.addr %s166, 8
      %s168 = scalar_lea.vmem %s0, %s167
      %p169 = scmp.lt.s32.totalorder %s18, 0
      %s170 = scalar_select %p169, %s18, 0
      %s171 = smul.addr %s170, 8
      %s172 = scalar_lea.vmem %s1, %s171
      %p173 = scmp.lt.s32.totalorder %s17, 1
      %s174 = scalar_select %p173, %s17, 1
      %p175 = scmp.lt.s32.totalorder %s18, 0
      %s176 = scalar_select %p175, %s18, 0
      %s177 = smul.addr %s174, 32
      %s178 = sadd.s32 %s176, %s177
      %s179 = smul.addr %s178, 8
      %s180 = scalar_lea.vmem %s2, %s179
      %p181 = scmp.eq.s32.totalorder %s18, 0
      // Predicated region
      $region29: #{new_complex_conv.1} parent=27 // pred_check
        %p182 = pneg %p181
      $region30: #{new_complex_conv.1} parent=27 // pred_check_branch
        %184 = sbr.rel (%p182) target = $region32
      $region31: #{new_complex_conv.1} parent=27 // pred_region
        %v185 = vld [vmem:[%s168] sm:$0xff]
        %v186 = vld [vmem:[%s168 + $0x8] sm:$0xff]
        %v187 = vld [vmem:[%s168 + $0x18] sm:$0xff]
        %v188 = vld [vmem:[%s168 + $0x20] sm:$0xff]
        %v189 = vld [vmem:[%s168 + $0x30] sm:$0xff]
        %v190 = vld [vmem:[%s168 + $0x38] sm:$0xff]
        %v191 = vld [vmem:[%s168 + $0x48] sm:$0xff]
        %v192 = vld [vmem:[%s168 + $0x50] sm:$0xff]
        %v193 = vld [vmem:[%s168 + $0x60] sm:$0xff]
        %v194 = vld [vmem:[%s168 + $0x68] sm:$0xff]
        %v195 = vld [vmem:[%s168 + $0x78] sm:$0xff]
        %v196 = vld [vmem:[%s168 + $0x80] sm:$0xff]
        %v197 = vld [vmem:[%s168 + $0x90] sm:$0xff]
        %v198 = vld [vmem:[%s168 + $0x98] sm:$0xff]
        %v199 = vld [vmem:[%s168 + $0xa8] sm:$0xff]
        %v200 = vld [vmem:[%s168 + $0xb0] sm:$0xff]
        %v201 = vld [vmem:[%s168 + $0xc0] sm:$0xff]
        %v202 = vld [vmem:[%s168 + $0xc8] sm:$0xff]
        %v203 = vld [vmem:[%s168 + $0xd8] sm:$0xff]
        %v204 = vld [vmem:[%s168 + $0xe0] sm:$0xff]
        %v205 = vld [vmem:[%s168 + $0xf0] sm:$0xff]
        %v206 = vld [vmem:[%s168 + $0xf8] sm:$0xff]
        %v207 = vld [vmem:[%s168 + $0x108] sm:$0xff]
        %v208 = vld [vmem:[%s168 + $0x110] sm:$0xff]
        %v209 = vld [vmem:[%s168 + $0x120] sm:$0xff]
        %v210 = vld [vmem:[%s168 + $0x128] sm:$0xff]
        %v211 = vld [vmem:[%s168 + $0x138] sm:$0xff]
        %v212 = vld [vmem:[%s168 + $0x140] sm:$0xff]
        %v213 = vld [vmem:[%s168 + $0x150] sm:$0xff]
        %v214 = vld [vmem:[%s168 + $0x158] sm:$0xff]
        %v215 = vld [vmem:[%s168 + $0x168] sm:$0xff]
        %v216 = vld [vmem:[%s168 + $0x170] sm:$0xff]
        %217 = vst [vmem:[#allocation2] sm:$0xff] %v185
        %218 = vst [vmem:[#allocation2 + $0x48] sm:$0xff] %v186
        %219 = vst [vmem:[#allocation2 + $0x90] sm:$0xff] %v187
        %220 = vst [vmem:[#allocation2 + $0xd8] sm:$0xff] %v188
        %221 = vst [vmem:[#allocation2 + $0x120] sm:$0xff] %v189
        %222 = vst [vmem:[#allocation2 + $0x168] sm:$0xff] %v190
        %223 = vst [vmem:[#allocation2 + $0x1b0] sm:$0xff] %v191
        %224 = vst [vmem:[#allocation2 + $0x1f8] sm:$0xff] %v192
        %225 = vst [vmem:[#allocation2 + $0x240] sm:$0xff] %v193
        %226 = vst [vmem:[#allocation2 + $0x288] sm:$0xff] %v194
        %227 = vst [vmem:[#allocation2 + $0x2d0] sm:$0xff] %v195
        %228 = vst [vmem:[#allocation2 + $0x318] sm:$0xff] %v196
        %229 = vst [vmem:[#allocation2 + $0x360] sm:$0xff] %v197
        %230 = vst [vmem:[#allocation2 + $0x3a8] sm:$0xff] %v198
        %231 = vst [vmem:[#allocation2 + $0x3f0] sm:$0xff] %v199
        %232 = vst [vmem:[#allocation2 + $0x438] sm:$0xff] %v200
        %233 = vst [vmem:[#allocation2 + $0x480] sm:$0xff] %v201
        %234 = vst [vmem:[#allocation2 + $0x4c8] sm:$0xff] %v202
        %235 = vst [vmem:[#allocation2 + $0x510] sm:$0xff] %v203
        %236 = vst [vmem:[#allocation2 + $0x558] sm:$0xff] %v204
        %237 = vst [vmem:[#allocation2 + $0x5a0] sm:$0xff] %v205
        %238 = vst [vmem:[#allocation2 + $0x5e8] sm:$0xff] %v206
        %239 = vst [vmem:[#allocation2 + $0x630] sm:$0xff] %v207
        %240 = vst [vmem:[#allocation2 + $0x678] sm:$0xff] %v208
        %241 = vst [vmem:[#allocation2 + $0x6c0] sm:$0xff] %v209
        %242 = vst [vmem:[#allocation2 + $0x708] sm:$0xff] %v210
        %243 = vst [vmem:[#allocation2 + $0x750] sm:$0xff] %v211
        %244 = vst [vmem:[#allocation2 + $0x798] sm:$0xff] %v212
        %245 = vst [vmem:[#allocation2 + $0x7e0] sm:$0xff] %v213
        %246 = vst [vmem:[#allocation2 + $0x828] sm:$0xff] %v214
        %247 = vst [vmem:[#allocation2 + $0x870] sm:$0xff] %v215
        %248 = vst [vmem:[#allocation2 + $0x8b8] sm:$0xff] %v216
        %v249 = vld [vmem:[%s168 + $0x1] sm:$0xff]
        %v250 = vld [vmem:[%s168 + $0x9] sm:$0xff]
        %v251 = vld [vmem:[%s168 + $0x19] sm:$0xff]
        %v252 = vld [vmem:[%s168 + $0x21] sm:$0xff]
        %v253 = vld [vmem:[%s168 + $0x31] sm:$0xff]
        %v254 = vld [vmem:[%s168 + $0x39] sm:$0xff]
        %v255 = vld [vmem:[%s168 + $0x49] sm:$0xff]
        %v256 = vld [vmem:[%s168 + $0x51] sm:$0xff]
        %v257 = vld [vmem:[%s168 + $0x61] sm:$0xff]
        %v258 = vld [vmem:[%s168 + $0x69] sm:$0xff]
        %v259 = vld [vmem:[%s168 + $0x79] sm:$0xff]
        %v260 = vld [vmem:[%s168 + $0x81] sm:$0xff]
        %v261 = vld [vmem:[%s168 + $0x91] sm:$0xff]
        %v262 = vld [vmem:[%s168 + $0x99] sm:$0xff]
        %v263 = vld [vmem:[%s168 + $0xa9] sm:$0xff]
        %v264 = vld [vmem:[%s168 + $0xb1] sm:$0xff]
        %v265 = vld [vmem:[%s168 + $0xc1] sm:$0xff]
        %v266 = vld [vmem:[%s168 + $0xc9] sm:$0xff]
        %v267 = vld [vmem:[%s168 + $0xd9] sm:$0xff]
        %v268 = vld [vmem:[%s168 + $0xe1] sm:$0xff]
        %v269 = vld [vmem:[%s168 + $0xf1] sm:$0xff]
        %v270 = vld [vmem:[%s168 + $0xf9] sm:$0xff]
        %v271 = vld [vmem:[%s168 + $0x109] sm:$0xff]
        %v272 = vld [vmem:[%s168 + $0x111] sm:$0xff]
        %v273 = vld [vmem:[%s168 + $0x121] sm:$0xff]
        %v274 = vld [vmem:[%s168 + $0x129] sm:$0xff]
        %v275 = vld [vmem:[%s168 + $0x139] sm:$0xff]
        %v276 = vld [vmem:[%s168 + $0x141] sm:$0xff]
        %v277 = vld [vmem:[%s168 + $0x151] sm:$0xff]
        %v278 = vld [vmem:[%s168 + $0x159] sm:$0xff]
        %v279 = vld [vmem:[%s168 + $0x169] sm:$0xff]
        %v280 = vld [vmem:[%s168 + $0x171] sm:$0xff]
        %281 = vst [vmem:[#allocation2 + $0x8] sm:$0xff] %v249
        %282 = vst [vmem:[#allocation2 + $0x50] sm:$0xff] %v250
        %283 = vst [vmem:[#allocation2 + $0x98] sm:$0xff] %v251
        %284 = vst [vmem:[#allocation2 + $0xe0] sm:$0xff] %v252
        %285 = vst [vmem:[#allocation2 + $0x128] sm:$0xff] %v253
        %286 = vst [vmem:[#allocation2 + $0x170] sm:$0xff] %v254
        %287 = vst [vmem:[#allocation2 + $0x1b8] sm:$0xff] %v255
        %288 = vst [vmem:[#allocation2 + $0x200] sm:$0xff] %v256
        %289 = vst [vmem:[#allocation2 + $0x248] sm:$0xff] %v257
        %290 = vst [vmem:[#allocation2 + $0x290] sm:$0xff] %v258
        %291 = vst [vmem:[#allocation2 + $0x2d8] sm:$0xff] %v259
        %292 = vst [vmem:[#allocation2 + $0x320] sm:$0xff] %v260
        %293 = vst [vmem:[#allocation2 + $0x368] sm:$0xff] %v261
        %294 = vst [vmem:[#allocation2 + $0x3b0] sm:$0xff] %v262
        %295 = vst [vmem:[#allocation2 + $0x3f8] sm:$0xff] %v263
        %296 = vst [vmem:[#allocation2 + $0x440] sm:$0xff] %v264
        %297 = vst [vmem:[#allocation2 + $0x488] sm:$0xff] %v265
        %298 = vst [vmem:[#allocation2 + $0x4d0] sm:$0xff] %v266
        %299 = vst [vmem:[#allocation2 + $0x518] sm:$0xff] %v267
        %300 = vst [vmem:[#allocation2 + $0x560] sm:$0xff] %v268
        %301 = vst [vmem:[#allocation2 + $0x5a8] sm:$0xff] %v269
        %302 = vst [vmem:[#allocation2 + $0x5f0] sm:$0xff] %v270
        %303 = vst [vmem:[#allocation2 + $0x638] sm:$0xff] %v271
        %304 = vst [vmem:[#allocation2 + $0x680] sm:$0xff] %v272
        %305 = vst [vmem:[#allocation2 + $0x6c8] sm:$0xff] %v273
        %306 = vst [vmem:[#allocation2 + $0x710] sm:$0xff] %v274
        %307 = vst [vmem:[#allocation2 + $0x758] sm:$0xff] %v275
        %308 = vst [vmem:[#allocation2 + $0x7a0] sm:$0xff] %v276
        %309 = vst [vmem:[#allocation2 + $0x7e8] sm:$0xff] %v277
        %310 = vst [vmem:[#allocation2 + $0x830] sm:$0xff] %v278
        %311 = vst [vmem:[#allocation2 + $0x878] sm:$0xff] %v279
        %312 = vst [vmem:[#allocation2 + $0x8c0] sm:$0xff] %v280
        %v313 = vld [vmem:[%s168 + $0x2] sm:$0xff]
        %v314 = vld [vmem:[%s168 + $0xa] sm:$0xff]
        %v315 = vld [vmem:[%s168 + $0x1a] sm:$0xff]
        %v316 = vld [vmem:[%s168 + $0x22] sm:$0xff]
        %v317 = vld [vmem:[%s168 + $0x32] sm:$0xff]
        %v318 = vld [vmem:[%s168 + $0x3a] sm:$0xff]
        %v319 = vld [vmem:[%s168 + $0x4a] sm:$0xff]
        %v320 = vld [vmem:[%s168 + $0x52] sm:$0xff]
        %v321 = vld [vmem:[%s168 + $0x62] sm:$0xff]
        %v322 = vld [vmem:[%s168 + $0x6a] sm:$0xff]
        %v323 = vld [vmem:[%s168 + $0x7a] sm:$0xff]
        %v324 = vld [vmem:[%s168 + $0x82] sm:$0xff]
        %v325 = vld [vmem:[%s168 + $0x92] sm:$0xff]
        %v326 = vld [vmem:[%s168 + $0x9a] sm:$0xff]
        %v327 = vld [vmem:[%s168 + $0xaa] sm:$0xff]
        %v328 = vld [vmem:[%s168 + $0xb2] sm:$0xff]
        %v329 = vld [vmem:[%s168 + $0xc2] sm:$0xff]
        %v330 = vld [vmem:[%s168 + $0xca] sm:$0xff]
        %v331 = vld [vmem:[%s168 + $0xda] sm:$0xff]
        %v332 = vld [vmem:[%s168 + $0xe2] sm:$0xff]
        %v333 = vld [vmem:[%s168 + $0xf2] sm:$0xff]
        %v334 = vld [vmem:[%s168 + $0xfa] sm:$0xff]
        %v335 = vld [vmem:[%s168 + $0x10a] sm:$0xff]
        %v336 = vld [vmem:[%s168 + $0x112] sm:$0xff]
        %v337 = vld [vmem:[%s168 + $0x122] sm:$0xff]
        %v338 = vld [vmem:[%s168 + $0x12a] sm:$0xff]
        %v339 = vld [vmem:[%s168 + $0x13a] sm:$0xff]
        %v340 = vld [vmem:[%s168 + $0x142] sm:$0xff]
        %v341 = vld [vmem:[%s168 + $0x152] sm:$0xff]
        %v342 = vld [vmem:[%s168 + $0x15a] sm:$0xff]
        %v343 = vld [vmem:[%s168 + $0x16a] sm:$0xff]
        %v344 = vld [vmem:[%s168 + $0x172] sm:$0xff]
        %345 = vst [vmem:[#allocation2 + $0x10] sm:$0xff] %v313
        %346 = vst [vmem:[#allocation2 + $0x58] sm:$0xff] %v314
        %347 = vst [vmem:[#allocation2 + $0xa0] sm:$0xff] %v315
        %348 = vst [vmem:[#allocation2 + $0xe8] sm:$0xff] %v316
        %349 = vst [vmem:[#allocation2 + $0x130] sm:$0xff] %v317
        %350 = vst [vmem:[#allocation2 + $0x178] sm:$0xff] %v318
        %351 = vst [vmem:[#allocation2 + $0x1c0] sm:$0xff] %v319
        %352 = vst [vmem:[#allocation2 + $0x208] sm:$0xff] %v320
        %353 = vst [vmem:[#allocation2 + $0x250] sm:$0xff] %v321
        %354 = vst [vmem:[#allocation2 + $0x298] sm:$0xff] %v322
        %355 = vst [vmem:[#allocation2 + $0x2e0] sm:$0xff] %v323
        %356 = vst [vmem:[#allocation2 + $0x328] sm:$0xff] %v324
        %357 = vst [vmem:[#allocation2 + $0x370] sm:$0xff] %v325
        %358 = vst [vmem:[#allocation2 + $0x3b8] sm:$0xff] %v326
        %359 = vst [vmem:[#allocation2 + $0x400] sm:$0xff] %v327
        %360 = vst [vmem:[#allocation2 + $0x448] sm:$0xff] %v328
        %361 = vst [vmem:[#allocation2 + $0x490] sm:$0xff] %v329
        %362 = vst [vmem:[#allocation2 + $0x4d8] sm:$0xff] %v330
        %363 = vst [vmem:[#allocation2 + $0x520] sm:$0xff] %v331
        %364 = vst [vmem:[#allocation2 + $0x568] sm:$0xff] %v332
        %365 = vst [vmem:[#allocation2 + $0x5b0] sm:$0xff] %v333
        %366 = vst [vmem:[#allocation2 + $0x5f8] sm:$0xff] %v334
        %367 = vst [vmem:[#allocation2 + $0x640] sm:$0xff] %v335
        %368 = vst [vmem:[#allocation2 + $0x688] sm:$0xff] %v336
        %369 = vst [vmem:[#allocation2 + $0x6d0] sm:$0xff] %v337
        %370 = vst [vmem:[#allocation2 + $0x718] sm:$0xff] %v338
        %371 = vst [vmem:[#allocation2 + $0x760] sm:$0xff] %v339
        %372 = vst [vmem:[#allocation2 + $0x7a8] sm:$0xff] %v340
        %373 = vst [vmem:[#allocation2 + $0x7f0] sm:$0xff] %v341
        %374 = vst [vmem:[#allocation2 + $0x838] sm:$0xff] %v342
        %375 = vst [vmem:[#allocation2 + $0x880] sm:$0xff] %v343
        %376 = vst [vmem:[#allocation2 + $0x8c8] sm:$0xff] %v344
        %s377 = scalar_lea.vmem %s168, 24
        %v378 = vld [vmem:[%s377] sm:$0xff]
        %v379 = vld [vmem:[%s377 + $0x8] sm:$0xff]
        %v380 = vld [vmem:[%s377 + $0x18] sm:$0xff]
        %v381 = vld [vmem:[%s377 + $0x20] sm:$0xff]
        %v382 = vld [vmem:[%s377 + $0x30] sm:$0xff]
        %v383 = vld [vmem:[%s377 + $0x38] sm:$0xff]
        %v384 = vld [vmem:[%s377 + $0x48] sm:$0xff]
        %v385 = vld [vmem:[%s377 + $0x50] sm:$0xff]
        %v386 = vld [vmem:[%s377 + $0x60] sm:$0xff]
        %v387 = vld [vmem:[%s377 + $0x68] sm:$0xff]
        %v388 = vld [vmem:[%s377 + $0x78] sm:$0xff]
        %v389 = vld [vmem:[%s377 + $0x80] sm:$0xff]
        %v390 = vld [vmem:[%s377 + $0x90] sm:$0xff]
        %v391 = vld [vmem:[%s377 + $0x98] sm:$0xff]
        %v392 = vld [vmem:[%s377 + $0xa8] sm:$0xff]
        %v393 = vld [vmem:[%s377 + $0xb0] sm:$0xff]
        %v394 = vld [vmem:[%s377 + $0xc0] sm:$0xff]
        %v395 = vld [vmem:[%s377 + $0xc8] sm:$0xff]
        %v396 = vld [vmem:[%s377 + $0xd8] sm:$0xff]
        %v397 = vld [vmem:[%s377 + $0xe0] sm:$0xff]
        %v398 = vld [vmem:[%s377 + $0xf0] sm:$0xff]
        %v399 = vld [vmem:[%s377 + $0xf8] sm:$0xff]
        %v400 = vld [vmem:[%s377 + $0x108] sm:$0xff]
        %v401 = vld [vmem:[%s377 + $0x110] sm:$0xff]
        %v402 = vld [vmem:[%s377 + $0x120] sm:$0xff]
        %v403 = vld [vmem:[%s377 + $0x128] sm:$0xff]
        %v404 = vld [vmem:[%s377 + $0x138] sm:$0xff]
        %v405 = vld [vmem:[%s377 + $0x140] sm:$0xff]
        %v406 = vld [vmem:[%s377 + $0x150] sm:$0xff]
        %v407 = vld [vmem:[%s377 + $0x158] sm:$0xff]
        %v408 = vld [vmem:[%s377 + $0x168] sm:$0xff]
        %v409 = vld [vmem:[%s377 + $0x170] sm:$0xff]
        %410 = vst [vmem:[#allocation2 + $0x18] sm:$0xff] %v378
        %411 = vst [vmem:[#allocation2 + $0x60] sm:$0xff] %v379
        %412 = vst [vmem:[#allocation2 + $0xa8] sm:$0xff] %v380
        %413 = vst [vmem:[#allocation2 + $0xf0] sm:$0xff] %v381
        %414 = vst [vmem:[#allocation2 + $0x138] sm:$0xff] %v382
        %415 = vst [vmem:[#allocation2 + $0x180] sm:$0xff] %v383
        %416 = vst [vmem:[#allocation2 + $0x1c8] sm:$0xff] %v384
        %417 = vst [vmem:[#allocation2 + $0x210] sm:$0xff] %v385
        %418 = vst [vmem:[#allocation2 + $0x258] sm:$0xff] %v386
        %419 = vst [vmem:[#allocation2 + $0x2a0] sm:$0xff] %v387
        %420 = vst [vmem:[#allocation2 + $0x2e8] sm:$0xff] %v388
        %421 = vst [vmem:[#allocation2 + $0x330] sm:$0xff] %v389
        %422 = vst [vmem:[#allocation2 + $0x378] sm:$0xff] %v390
        %423 = vst [vmem:[#allocation2 + $0x3c0] sm:$0xff] %v391
        %424 = vst [vmem:[#allocation2 + $0x408] sm:$0xff] %v392
        %425 = vst [vmem:[#allocation2 + $0x450] sm:$0xff] %v393
        %426 = vst [vmem:[#allocation2 + $0x498] sm:$0xff] %v394
        %427 = vst [vmem:[#allocation2 + $0x4e0] sm:$0xff] %v395
        %428 = vst [vmem:[#allocation2 + $0x528] sm:$0xff] %v396
        %429 = vst [vmem:[#allocation2 + $0x570] sm:$0xff] %v397
        %430 = vst [vmem:[#allocation2 + $0x5b8] sm:$0xff] %v398
        %431 = vst [vmem:[#allocation2 + $0x600] sm:$0xff] %v399
        %432 = vst [vmem:[#allocation2 + $0x648] sm:$0xff] %v400
        %433 = vst [vmem:[#allocation2 + $0x690] sm:$0xff] %v401
        %434 = vst [vmem:[#allocation2 + $0x6d8] sm:$0xff] %v402
        %435 = vst [vmem:[#allocation2 + $0x720] sm:$0xff] %v403
        %436 = vst [vmem:[#allocation2 + $0x768] sm:$0xff] %v404
        %437 = vst [vmem:[#allocation2 + $0x7b0] sm:$0xff] %v405
        %438 = vst [vmem:[#allocation2 + $0x7f8] sm:$0xff] %v406
        %439 = vst [vmem:[#allocation2 + $0x840] sm:$0xff] %v407
        %440 = vst [vmem:[#allocation2 + $0x888] sm:$0xff] %v408
        %441 = vst [vmem:[#allocation2 + $0x8d0] sm:$0xff] %v409
        %v442 = vld [vmem:[%s377 + $0x1] sm:$0xff]
        %v443 = vld [vmem:[%s377 + $0x9] sm:$0xff]
        %v444 = vld [vmem:[%s377 + $0x19] sm:$0xff]
        %v445 = vld [vmem:[%s377 + $0x21] sm:$0xff]
        %v446 = vld [vmem:[%s377 + $0x31] sm:$0xff]
        %v447 = vld [vmem:[%s377 + $0x39] sm:$0xff]
        %v448 = vld [vmem:[%s377 + $0x49] sm:$0xff]
        %v449 = vld [vmem:[%s377 + $0x51] sm:$0xff]
        %v450 = vld [vmem:[%s377 + $0x61] sm:$0xff]
        %v451 = vld [vmem:[%s377 + $0x69] sm:$0xff]
        %v452 = vld [vmem:[%s377 + $0x79] sm:$0xff]
        %v453 = vld [vmem:[%s377 + $0x81] sm:$0xff]
        %v454 = vld [vmem:[%s377 + $0x91] sm:$0xff]
        %v455 = vld [vmem:[%s377 + $0x99] sm:$0xff]
        %v456 = vld [vmem:[%s377 + $0xa9] sm:$0xff]
        %v457 = vld [vmem:[%s377 + $0xb1] sm:$0xff]
        %v458 = vld [vmem:[%s377 + $0xc1] sm:$0xff]
        %v459 = vld [vmem:[%s377 + $0xc9] sm:$0xff]
        %v460 = vld [vmem:[%s377 + $0xd9] sm:$0xff]
        %v461 = vld [vmem:[%s377 + $0xe1] sm:$0xff]
        %v462 = vld [vmem:[%s377 + $0xf1] sm:$0xff]
        %v463 = vld [vmem:[%s377 + $0xf9] sm:$0xff]
        %v464 = vld [vmem:[%s377 + $0x109] sm:$0xff]
        %v465 = vld [vmem:[%s377 + $0x111] sm:$0xff]
        %v466 = vld [vmem:[%s377 + $0x121] sm:$0xff]
        %v467 = vld [vmem:[%s377 + $0x129] sm:$0xff]
        %v468 = vld [vmem:[%s377 + $0x139] sm:$0xff]
        %v469 = vld [vmem:[%s377 + $0x141] sm:$0xff]
        %v470 = vld [vmem:[%s377 + $0x151] sm:$0xff]
        %v471 = vld [vmem:[%s377 + $0x159] sm:$0xff]
        %v472 = vld [vmem:[%s377 + $0x169] sm:$0xff]
        %v473 = vld [vmem:[%s377 + $0x171] sm:$0xff]
        %474 = vst [vmem:[#allocation2 + $0x20] sm:$0xff] %v442
        %475 = vst [vmem:[#allocation2 + $0x68] sm:$0xff] %v443
        %476 = vst [vmem:[#allocation2 + $0xb0] sm:$0xff] %v444
        %477 = vst [vmem:[#allocation2 + $0xf8] sm:$0xff] %v445
        %478 = vst [vmem:[#allocation2 + $0x140] sm:$0xff] %v446
        %479 = vst [vmem:[#allocation2 + $0x188] sm:$0xff] %v447
        %480 = vst [vmem:[#allocation2 + $0x1d0] sm:$0xff] %v448
        %481 = vst [vmem:[#allocation2 + $0x218] sm:$0xff] %v449
        %482 = vst [vmem:[#allocation2 + $0x260] sm:$0xff] %v450
        %483 = vst [vmem:[#allocation2 + $0x2a8] sm:$0xff] %v451
        %484 = vst [vmem:[#allocation2 + $0x2f0] sm:$0xff] %v452
        %485 = vst [vmem:[#allocation2 + $0x338] sm:$0xff] %v453
        %486 = vst [vmem:[#allocation2 + $0x380] sm:$0xff] %v454
        %487 = vst [vmem:[#allocation2 + $0x3c8] sm:$0xff] %v455
        %488 = vst [vmem:[#allocation2 + $0x410] sm:$0xff] %v456
        %489 = vst [vmem:[#allocation2 + $0x458] sm:$0xff] %v457
        %490 = vst [vmem:[#allocation2 + $0x4a0] sm:$0xff] %v458
        %491 = vst [vmem:[#allocation2 + $0x4e8] sm:$0xff] %v459
        %492 = vst [vmem:[#allocation2 + $0x530] sm:$0xff] %v460
        %493 = vst [vmem:[#allocation2 + $0x578] sm:$0xff] %v461
        %494 = vst [vmem:[#allocation2 + $0x5c0] sm:$0xff] %v462
        %495 = vst [vmem:[#allocation2 + $0x608] sm:$0xff] %v463
        %496 = vst [vmem:[#allocation2 + $0x650] sm:$0xff] %v464
        %497 = vst [vmem:[#allocation2 + $0x698] sm:$0xff] %v465
        %498 = vst [vmem:[#allocation2 + $0x6e0] sm:$0xff] %v466
        %499 = vst [vmem:[#allocation2 + $0x728] sm:$0xff] %v467
        %500 = vst [vmem:[#allocation2 + $0x770] sm:$0xff] %v468
        %501 = vst [vmem:[#allocation2 + $0x7b8] sm:$0xff] %v469
        %502 = vst [vmem:[#allocation2 + $0x800] sm:$0xff] %v470
        %503 = vst [vmem:[#allocation2 + $0x848] sm:$0xff] %v471
        %504 = vst [vmem:[#allocation2 + $0x890] sm:$0xff] %v472
        %505 = vst [vmem:[#allocation2 + $0x8d8] sm:$0xff] %v473
        %v506 = vld [vmem:[%s377 + $0x2] sm:$0xff]
        %v507 = vld [vmem:[%s377 + $0xa] sm:$0xff]
        %v508 = vld [vmem:[%s377 + $0x1a] sm:$0xff]
        %v509 = vld [vmem:[%s377 + $0x22] sm:$0xff]
        %v510 = vld [vmem:[%s377 + $0x32] sm:$0xff]
        %v511 = vld [vmem:[%s377 + $0x3a] sm:$0xff]
        %v512 = vld [vmem:[%s377 + $0x4a] sm:$0xff]
        %v513 = vld [vmem:[%s377 + $0x52] sm:$0xff]
        %v514 = vld [vmem:[%s377 + $0x62] sm:$0xff]
        %v515 = vld [vmem:[%s377 + $0x6a] sm:$0xff]
        %v516 = vld [vmem:[%s377 + $0x7a] sm:$0xff]
        %v517 = vld [vmem:[%s377 + $0x82] sm:$0xff]
        %v518 = vld [vmem:[%s377 + $0x92] sm:$0xff]
        %v519 = vld [vmem:[%s377 + $0x9a] sm:$0xff]
        %v520 = vld [vmem:[%s377 + $0xaa] sm:$0xff]
        %v521 = vld [vmem:[%s377 + $0xb2] sm:$0xff]
        %v522 = vld [vmem:[%s377 + $0xc2] sm:$0xff]
        %v523 = vld [vmem:[%s377 + $0xca] sm:$0xff]
        %v524 = vld [vmem:[%s377 + $0xda] sm:$0xff]
        %v525 = vld [vmem:[%s377 + $0xe2] sm:$0xff]
        %v526 = vld [vmem:[%s377 + $0xf2] sm:$0xff]
        %v527 = vld [vmem:[%s377 + $0xfa] sm:$0xff]
        %v528 = vld [vmem:[%s377 + $0x10a] sm:$0xff]
        %v529 = vld [vmem:[%s377 + $0x112] sm:$0xff]
        %v530 = vld [vmem:[%s377 + $0x122] sm:$0xff]
        %v531 = vld [vmem:[%s377 + $0x12a] sm:$0xff]
        %v532 = vld [vmem:[%s377 + $0x13a] sm:$0xff]
        %v533 = vld [vmem:[%s377 + $0x142] sm:$0xff]
        %v534 = vld [vmem:[%s377 + $0x152] sm:$0xff]
        %v535 = vld [vmem:[%s377 + $0x15a] sm:$0xff]
        %v536 = vld [vmem:[%s377 + $0x16a] sm:$0xff]
        %v537 = vld [vmem:[%s377 + $0x172] sm:$0xff]
        %538 = vst [vmem:[#allocation2 + $0x28] sm:$0xff] %v506
        %539 = vst [vmem:[#allocation2 + $0x70] sm:$0xff] %v507
        %540 = vst [vmem:[#allocation2 + $0xb8] sm:$0xff] %v508
        %541 = vst [vmem:[#allocation2 + $0x100] sm:$0xff] %v509
        %542 = vst [vmem:[#allocation2 + $0x148] sm:$0xff] %v510
        %543 = vst [vmem:[#allocation2 + $0x190] sm:$0xff] %v511
        %544 = vst [vmem:[#allocation2 + $0x1d8] sm:$0xff] %v512
        %545 = vst [vmem:[#allocation2 + $0x220] sm:$0xff] %v513
        %546 = vst [vmem:[#allocation2 + $0x268] sm:$0xff] %v514
        %547 = vst [vmem:[#allocation2 + $0x2b0] sm:$0xff] %v515
        %548 = vst [vmem:[#allocation2 + $0x2f8] sm:$0xff] %v516
        %549 = vst [vmem:[#allocation2 + $0x340] sm:$0xff] %v517
        %550 = vst [vmem:[#allocation2 + $0x388] sm:$0xff] %v518
        %551 = vst [vmem:[#allocation2 + $0x3d0] sm:$0xff] %v519
        %552 = vst [vmem:[#allocation2 + $0x418] sm:$0xff] %v520
        %553 = vst [vmem:[#allocation2 + $0x460] sm:$0xff] %v521
        %554 = vst [vmem:[#allocation2 + $0x4a8] sm:$0xff] %v522
        %555 = vst [vmem:[#allocation2 + $0x4f0] sm:$0xff] %v523
        %556 = vst [vmem:[#allocation2 + $0x538] sm:$0xff] %v524
        %557 = vst [vmem:[#allocation2 + $0x580] sm:$0xff] %v525
        %558 = vst [vmem:[#allocation2 + $0x5c8] sm:$0xff] %v526
        %559 = vst [vmem:[#allocation2 + $0x610] sm:$0xff] %v527
        %560 = vst [vmem:[#allocation2 + $0x658] sm:$0xff] %v528
        %561 = vst [vmem:[#allocation2 + $0x6a0] sm:$0xff] %v529
        %562 = vst [vmem:[#allocation2 + $0x6e8] sm:$0xff] %v530
        %563 = vst [vmem:[#allocation2 + $0x730] sm:$0xff] %v531
        %564 = vst [vmem:[#allocation2 + $0x778] sm:$0xff] %v532
        %565 = vst [vmem:[#allocation2 + $0x7c0] sm:$0xff] %v533
        %566 = vst [vmem:[#allocation2 + $0x808] sm:$0xff] %v534
        %567 = vst [vmem:[#allocation2 + $0x850] sm:$0xff] %v535
        %568 = vst [vmem:[#allocation2 + $0x898] sm:$0xff] %v536
        %569 = vst [vmem:[#allocation2 + $0x8e0] sm:$0xff] %v537
        %s570 = scalar_lea.vmem %s168, 48
        %v571 = vld [vmem:[%s570] sm:$0xff]
        %v572 = vld [vmem:[%s570 + $0x8] sm:$0xff]
        %v573 = vld [vmem:[%s570 + $0x18] sm:$0xff]
        %v574 = vld [vmem:[%s570 + $0x20] sm:$0xff]
        %v575 = vld [vmem:[%s570 + $0x30] sm:$0xff]
        %v576 = vld [vmem:[%s570 + $0x38] sm:$0xff]
        %v577 = vld [vmem:[%s570 + $0x48] sm:$0xff]
        %v578 = vld [vmem:[%s570 + $0x50] sm:$0xff]
        %v579 = vld [vmem:[%s570 + $0x60] sm:$0xff]
        %v580 = vld [vmem:[%s570 + $0x68] sm:$0xff]
        %v581 = vld [vmem:[%s570 + $0x78] sm:$0xff]
        %v582 = vld [vmem:[%s570 + $0x80] sm:$0xff]
        %v583 = vld [vmem:[%s570 + $0x90] sm:$0xff]
        %v584 = vld [vmem:[%s570 + $0x98] sm:$0xff]
        %v585 = vld [vmem:[%s570 + $0xa8] sm:$0xff]
        %v586 = vld [vmem:[%s570 + $0xb0] sm:$0xff]
        %v587 = vld [vmem:[%s570 + $0xc0] sm:$0xff]
        %v588 = vld [vmem:[%s570 + $0xc8] sm:$0xff]
        %v589 = vld [vmem:[%s570 + $0xd8] sm:$0xff]
        %v590 = vld [vmem:[%s570 + $0xe0] sm:$0xff]
        %v591 = vld [vmem:[%s570 + $0xf0] sm:$0xff]
        %v592 = vld [vmem:[%s570 + $0xf8] sm:$0xff]
        %v593 = vld [vmem:[%s570 + $0x108] sm:$0xff]
        %v594 = vld [vmem:[%s570 + $0x110] sm:$0xff]
        %v595 = vld [vmem:[%s570 + $0x120] sm:$0xff]
        %v596 = vld [vmem:[%s570 + $0x128] sm:$0xff]
        %v597 = vld [vmem:[%s570 + $0x138] sm:$0xff]
        %v598 = vld [vmem:[%s570 + $0x140] sm:$0xff]
        %v599 = vld [vmem:[%s570 + $0x150] sm:$0xff]
        %v600 = vld [vmem:[%s570 + $0x158] sm:$0xff]
        %v601 = vld [vmem:[%s570 + $0x168] sm:$0xff]
        %v602 = vld [vmem:[%s570 + $0x170] sm:$0xff]
        %603 = vst [vmem:[#allocation2 + $0x30] sm:$0xff] %v571
        %604 = vst [vmem:[#allocation2 + $0x78] sm:$0xff] %v572
        %605 = vst [vmem:[#allocation2 + $0xc0] sm:$0xff] %v573
        %606 = vst [vmem:[#allocation2 + $0x108] sm:$0xff] %v574
        %607 = vst [vmem:[#allocation2 + $0x150] sm:$0xff] %v575
        %608 = vst [vmem:[#allocation2 + $0x198] sm:$0xff] %v576
        %609 = vst [vmem:[#allocation2 + $0x1e0] sm:$0xff] %v577
        %610 = vst [vmem:[#allocation2 + $0x228] sm:$0xff] %v578
        %611 = vst [vmem:[#allocation2 + $0x270] sm:$0xff] %v579
        %612 = vst [vmem:[#allocation2 + $0x2b8] sm:$0xff] %v580
        %613 = vst [vmem:[#allocation2 + $0x300] sm:$0xff] %v581
        %614 = vst [vmem:[#allocation2 + $0x348] sm:$0xff] %v582
        %615 = vst [vmem:[#allocation2 + $0x390] sm:$0xff] %v583
        %616 = vst [vmem:[#allocation2 + $0x3d8] sm:$0xff] %v584
        %617 = vst [vmem:[#allocation2 + $0x420] sm:$0xff] %v585
        %618 = vst [vmem:[#allocation2 + $0x468] sm:$0xff] %v586
        %619 = vst [vmem:[#allocation2 + $0x4b0] sm:$0xff] %v587
        %620 = vst [vmem:[#allocation2 + $0x4f8] sm:$0xff] %v588
        %621 = vst [vmem:[#allocation2 + $0x540] sm:$0xff] %v589
        %622 = vst [vmem:[#allocation2 + $0x588] sm:$0xff] %v590
        %623 = vst [vmem:[#allocation2 + $0x5d0] sm:$0xff] %v591
        %624 = vst [vmem:[#allocation2 + $0x618] sm:$0xff] %v592
        %625 = vst [vmem:[#allocation2 + $0x660] sm:$0xff] %v593
        %626 = vst [vmem:[#allocation2 + $0x6a8] sm:$0xff] %v594
        %627 = vst [vmem:[#allocation2 + $0x6f0] sm:$0xff] %v595
        %628 = vst [vmem:[#allocation2 + $0x738] sm:$0xff] %v596
        %629 = vst [vmem:[#allocation2 + $0x780] sm:$0xff] %v597
        %630 = vst [vmem:[#allocation2 + $0x7c8] sm:$0xff] %v598
        %631 = vst [vmem:[#allocation2 + $0x810] sm:$0xff] %v599
        %632 = vst [vmem:[#allocation2 + $0x858] sm:$0xff] %v600
        %633 = vst [vmem:[#allocation2 + $0x8a0] sm:$0xff] %v601
        %634 = vst [vmem:[#allocation2 + $0x8e8] sm:$0xff] %v602
        %v635 = vld [vmem:[%s570 + $0x1] sm:$0xff]
        %v636 = vld [vmem:[%s570 + $0x9] sm:$0xff]
        %v637 = vld [vmem:[%s570 + $0x19] sm:$0xff]
        %v638 = vld [vmem:[%s570 + $0x21] sm:$0xff]
        %v639 = vld [vmem:[%s570 + $0x31] sm:$0xff]
        %v640 = vld [vmem:[%s570 + $0x39] sm:$0xff]
        %v641 = vld [vmem:[%s570 + $0x49] sm:$0xff]
        %v642 = vld [vmem:[%s570 + $0x51] sm:$0xff]
        %v643 = vld [vmem:[%s570 + $0x61] sm:$0xff]
        %v644 = vld [vmem:[%s570 + $0x69] sm:$0xff]
        %v645 = vld [vmem:[%s570 + $0x79] sm:$0xff]
        %v646 = vld [vmem:[%s570 + $0x81] sm:$0xff]
        %v647 = vld [vmem:[%s570 + $0x91] sm:$0xff]
        %v648 = vld [vmem:[%s570 + $0x99] sm:$0xff]
        %v649 = vld [vmem:[%s570 + $0xa9] sm:$0xff]
        %v650 = vld [vmem:[%s570 + $0xb1] sm:$0xff]
        %v651 = vld [vmem:[%s570 + $0xc1] sm:$0xff]
        %v652 = vld [vmem:[%s570 + $0xc9] sm:$0xff]
        %v653 = vld [vmem:[%s570 + $0xd9] sm:$0xff]
        %v654 = vld [vmem:[%s570 + $0xe1] sm:$0xff]
        %v655 = vld [vmem:[%s570 + $0xf1] sm:$0xff]
        %v656 = vld [vmem:[%s570 + $0xf9] sm:$0xff]
        %v657 = vld [vmem:[%s570 + $0x109] sm:$0xff]
        %v658 = vld [vmem:[%s570 + $0x111] sm:$0xff]
        %v659 = vld [vmem:[%s570 + $0x121] sm:$0xff]
        %v660 = vld [vmem:[%s570 + $0x129] sm:$0xff]
        %v661 = vld [vmem:[%s570 + $0x139] sm:$0xff]
        %v662 = vld [vmem:[%s570 + $0x141] sm:$0xff]
        %v663 = vld [vmem:[%s570 + $0x151] sm:$0xff]
        %v664 = vld [vmem:[%s570 + $0x159] sm:$0xff]
        %v665 = vld [vmem:[%s570 + $0x169] sm:$0xff]
        %v666 = vld [vmem:[%s570 + $0x171] sm:$0xff]
        %667 = vst [vmem:[#allocation2 + $0x38] sm:$0xff] %v635
        %668 = vst [vmem:[#allocation2 + $0x80] sm:$0xff] %v636
        %669 = vst [vmem:[#allocation2 + $0xc8] sm:$0xff] %v637
        %670 = vst [vmem:[#allocation2 + $0x110] sm:$0xff] %v638
        %671 = vst [vmem:[#allocation2 + $0x158] sm:$0xff] %v639
        %672 = vst [vmem:[#allocation2 + $0x1a0] sm:$0xff] %v640
        %673 = vst [vmem:[#allocation2 + $0x1e8] sm:$0xff] %v641
        %674 = vst [vmem:[#allocation2 + $0x230] sm:$0xff] %v642
        %675 = vst [vmem:[#allocation2 + $0x278] sm:$0xff] %v643
        %676 = vst [vmem:[#allocation2 + $0x2c0] sm:$0xff] %v644
        %677 = vst [vmem:[#allocation2 + $0x308] sm:$0xff] %v645
        %678 = vst [vmem:[#allocation2 + $0x350] sm:$0xff] %v646
        %679 = vst [vmem:[#allocation2 + $0x398] sm:$0xff] %v647
        %680 = vst [vmem:[#allocation2 + $0x3e0] sm:$0xff] %v648
        %681 = vst [vmem:[#allocation2 + $0x428] sm:$0xff] %v649
        %682 = vst [vmem:[#allocation2 + $0x470] sm:$0xff] %v650
        %683 = vst [vmem:[#allocation2 + $0x4b8] sm:$0xff] %v651
        %684 = vst [vmem:[#allocation2 + $0x500] sm:$0xff] %v652
        %685 = vst [vmem:[#allocation2 + $0x548] sm:$0xff] %v653
        %686 = vst [vmem:[#allocation2 + $0x590] sm:$0xff] %v654
        %687 = vst [vmem:[#allocation2 + $0x5d8] sm:$0xff] %v655
        %688 = vst [vmem:[#allocation2 + $0x620] sm:$0xff] %v656
        %689 = vst [vmem:[#allocation2 + $0x668] sm:$0xff] %v657
        %690 = vst [vmem:[#allocation2 + $0x6b0] sm:$0xff] %v658
        %691 = vst [vmem:[#allocation2 + $0x6f8] sm:$0xff] %v659
        %692 = vst [vmem:[#allocation2 + $0x740] sm:$0xff] %v660
        %693 = vst [vmem:[#allocation2 + $0x788] sm:$0xff] %v661
        %694 = vst [vmem:[#allocation2 + $0x7d0] sm:$0xff] %v662
        %695 = vst [vmem:[#allocation2 + $0x818] sm:$0xff] %v663
        %696 = vst [vmem:[#allocation2 + $0x860] sm:$0xff] %v664
        %697 = vst [vmem:[#allocation2 + $0x8a8] sm:$0xff] %v665
        %698 = vst [vmem:[#allocation2 + $0x8f0] sm:$0xff] %v666
        %v699 = vld [vmem:[%s570 + $0x2] sm:$0xff]
        %v700 = vld [vmem:[%s570 + $0xa] sm:$0xff]
        %v701 = vld [vmem:[%s570 + $0x1a] sm:$0xff]
        %v702 = vld [vmem:[%s570 + $0x22] sm:$0xff]
        %v703 = vld [vmem:[%s570 + $0x32] sm:$0xff]
        %v704 = vld [vmem:[%s570 + $0x3a] sm:$0xff]
        %v705 = vld [vmem:[%s570 + $0x4a] sm:$0xff]
        %v706 = vld [vmem:[%s570 + $0x52] sm:$0xff]
        %v707 = vld [vmem:[%s570 + $0x62] sm:$0xff]
        %v708 = vld [vmem:[%s570 + $0x6a] sm:$0xff]
        %v709 = vld [vmem:[%s570 + $0x7a] sm:$0xff]
        %v710 = vld [vmem:[%s570 + $0x82] sm:$0xff]
        %v711 = vld [vmem:[%s570 + $0x92] sm:$0xff]
        %v712 = vld [vmem:[%s570 + $0x9a] sm:$0xff]
        %v713 = vld [vmem:[%s570 + $0xaa] sm:$0xff]
        %v714 = vld [vmem:[%s570 + $0xb2] sm:$0xff]
        %v715 = vld [vmem:[%s570 + $0xc2] sm:$0xff]
        %v716 = vld [vmem:[%s570 + $0xca] sm:$0xff]
        %v717 = vld [vmem:[%s570 + $0xda] sm:$0xff]
        %v718 = vld [vmem:[%s570 + $0xe2] sm:$0xff]
        %v719 = vld [vmem:[%s570 + $0xf2] sm:$0xff]
        %v720 = vld [vmem:[%s570 + $0xfa] sm:$0xff]
        %v721 = vld [vmem:[%s570 + $0x10a] sm:$0xff]
        %v722 = vld [vmem:[%s570 + $0x112] sm:$0xff]
        %v723 = vld [vmem:[%s570 + $0x122] sm:$0xff]
        %v724 = vld [vmem:[%s570 + $0x12a] sm:$0xff]
        %v725 = vld [vmem:[%s570 + $0x13a] sm:$0xff]
        %v726 = vld [vmem:[%s570 + $0x142] sm:$0xff]
        %v727 = vld [vmem:[%s570 + $0x152] sm:$0xff]
        %v728 = vld [vmem:[%s570 + $0x15a] sm:$0xff]
        %v729 = vld [vmem:[%s570 + $0x16a] sm:$0xff]
        %v730 = vld [vmem:[%s570 + $0x172] sm:$0xff]
        %731 = vst [vmem:[#allocation2 + $0x40] sm:$0xff] %v699
        %732 = vst [vmem:[#allocation2 + $0x88] sm:$0xff] %v700
        %733 = vst [vmem:[#allocation2 + $0xd0] sm:$0xff] %v701
        %734 = vst [vmem:[#allocation2 + $0x118] sm:$0xff] %v702
        %735 = vst [vmem:[#allocation2 + $0x160] sm:$0xff] %v703
        %736 = vst [vmem:[#allocation2 + $0x1a8] sm:$0xff] %v704
        %737 = vst [vmem:[#allocation2 + $0x1f0] sm:$0xff] %v705
        %738 = vst [vmem:[#allocation2 + $0x238] sm:$0xff] %v706
        %739 = vst [vmem:[#allocation2 + $0x280] sm:$0xff] %v707
        %740 = vst [vmem:[#allocation2 + $0x2c8] sm:$0xff] %v708
        %741 = vst [vmem:[#allocation2 + $0x310] sm:$0xff] %v709
        %742 = vst [vmem:[#allocation2 + $0x358] sm:$0xff] %v710
        %743 = vst [vmem:[#allocation2 + $0x3a0] sm:$0xff] %v711
        %744 = vst [vmem:[#allocation2 + $0x3e8] sm:$0xff] %v712
        %745 = vst [vmem:[#allocation2 + $0x430] sm:$0xff] %v713
        %746 = vst [vmem:[#allocation2 + $0x478] sm:$0xff] %v714
        %747 = vst [vmem:[#allocation2 + $0x4c0] sm:$0xff] %v715
        %748 = vst [vmem:[#allocation2 + $0x508] sm:$0xff] %v716
        %749 = vst [vmem:[#allocation2 + $0x550] sm:$0xff] %v717
        %750 = vst [vmem:[#allocation2 + $0x598] sm:$0xff] %v718
        %751 = vst [vmem:[#allocation2 + $0x5e0] sm:$0xff] %v719
        %752 = vst [vmem:[#allocation2 + $0x628] sm:$0xff] %v720
        %753 = vst [vmem:[#allocation2 + $0x670] sm:$0xff] %v721
        %754 = vst [vmem:[#allocation2 + $0x6b8] sm:$0xff] %v722
        %755 = vst [vmem:[#allocation2 + $0x700] sm:$0xff] %v723
        %756 = vst [vmem:[#allocation2 + $0x748] sm:$0xff] %v724
        %757 = vst [vmem:[#allocation2 + $0x790] sm:$0xff] %v725
        %758 = vst [vmem:[#allocation2 + $0x7d8] sm:$0xff] %v726
        %759 = vst [vmem:[#allocation2 + $0x820] sm:$0xff] %v727
        %760 = vst [vmem:[#allocation2 + $0x868] sm:$0xff] %v728
        %761 = vst [vmem:[#allocation2 + $0x8b0] sm:$0xff] %v729
        %762 = vst [vmem:[#allocation2 + $0x8f8] sm:$0xff] %v730
      $region32: #{new_complex_conv.1} parent=27 // pred_fallthru
        _
      %v763 = vld [vmem:[#allocation2] sm:$0xff]
      %v764 = vld [vmem:[#allocation2 + $0x8] sm:$0xff]
      %v765 = vld [vmem:[#allocation2 + $0x10] sm:$0xff]
      %v766 = vld [vmem:[#allocation2 + $0x18] sm:$0xff]
      %v767 = vld [vmem:[#allocation2 + $0x20] sm:$0xff]
      %v768 = vld [vmem:[#allocation2 + $0x28] sm:$0xff]
      %v769 = vld [vmem:[#allocation2 + $0x30] sm:$0xff]
      %v770 = vld [vmem:[#allocation2 + $0x38] sm:$0xff]
      %v771 = vld [vmem:[#allocation2 + $0x40] sm:$0xff]
      %v772 = vld [vmem:[#allocation2 + $0x48] sm:$0xff]
      %v773 = vld [vmem:[#allocation2 + $0x50] sm:$0xff]
      %v774 = vld [vmem:[#allocation2 + $0x58] sm:$0xff]
      %v775 = vld [vmem:[#allocation2 + $0x60] sm:$0xff]
      %v776 = vld [vmem:[#allocation2 + $0x68] sm:$0xff]
      %v777 = vld [vmem:[#allocation2 + $0x70] sm:$0xff]
      %v778 = vld [vmem:[#allocation2 + $0x78] sm:$0xff]
      %v779 = vld [vmem:[#allocation2 + $0x80] sm:$0xff]
      %v780 = vld [vmem:[#allocation2 + $0x88] sm:$0xff]
      %v781 = vld [vmem:[#allocation2 + $0x90] sm:$0xff]
      %v782 = vld [vmem:[#allocation2 + $0x98] sm:$0xff]
      %v783 = vld [vmem:[#allocation2 + $0xa0] sm:$0xff]
      %v784 = vld [vmem:[#allocation2 + $0xa8] sm:$0xff]
      %v785 = vld [vmem:[#allocation2 + $0xb0] sm:$0xff]
      %v786 = vld [vmem:[#allocation2 + $0xb8] sm:$0xff]
      %v787 = vld [vmem:[#allocation2 + $0xc0] sm:$0xff]
      %v788 = vld [vmem:[#allocation2 + $0xc8] sm:$0xff]
      %v789 = vld [vmem:[#allocation2 + $0xd0] sm:$0xff]
      %v790 = vld [vmem:[#allocation2 + $0xd8] sm:$0xff]
      %v791 = vld [vmem:[#allocation2 + $0xe0] sm:$0xff]
      %v792 = vld [vmem:[#allocation2 + $0xe8] sm:$0xff]
      %v793 = vld [vmem:[#allocation2 + $0xf0] sm:$0xff]
      %v794 = vld [vmem:[#allocation2 + $0xf8] sm:$0xff]
      %v795 = vld [vmem:[#allocation2 + $0x100] sm:$0xff]
      %v796 = vld [vmem:[#allocation2 + $0x108] sm:$0xff]
      %v797 = vld [vmem:[#allocation2 + $0x110] sm:$0xff]
      %v798 = vld [vmem:[#allocation2 + $0x118] sm:$0xff]
      %v799 = vld [vmem:[#allocation2 + $0x120] sm:$0xff]
      %v800 = vld [vmem:[#allocation2 + $0x128] sm:$0xff]
      %v801 = vld [vmem:[#allocation2 + $0x130] sm:$0xff]
      %v802 = vld [vmem:[#allocation2 + $0x138] sm:$0xff]
      %v803 = vld [vmem:[#allocation2 + $0x140] sm:$0xff]
      %v804 = vld [vmem:[#allocation2 + $0x148] sm:$0xff]
      %v805 = vld [vmem:[#allocation2 + $0x150] sm:$0xff]
      %v806 = vld [vmem:[#allocation2 + $0x158] sm:$0xff]
      %v807 = vld [vmem:[#allocation2 + $0x160] sm:$0xff]
      %v808 = vld [vmem:[#allocation2 + $0x168] sm:$0xff]
      %v809 = vld [vmem:[#allocation2 + $0x170] sm:$0xff]
      %v810 = vld [vmem:[#allocation2 + $0x178] sm:$0xff]
      %v811 = vld [vmem:[#allocation2 + $0x180] sm:$0xff]
      %v812 = vld [vmem:[#allocation2 + $0x188] sm:$0xff]
      %v813 = vld [vmem:[#allocation2 + $0x190] sm:$0xff]
      %v814 = vld [vmem:[#allocation2 + $0x198] sm:$0xff]
      %v815 = vld [vmem:[#allocation2 + $0x1a0] sm:$0xff]
      %v816 = vld [vmem:[#allocation2 + $0x1a8] sm:$0xff]
      %v817 = vld [vmem:[#allocation2 + $0x1b0] sm:$0xff]
      %v818 = vld [vmem:[#allocation2 + $0x1b8] sm:$0xff]
      %v819 = vld [vmem:[#allocation2 + $0x1c0] sm:$0xff]
      %v820 = vld [vmem:[#allocation2 + $0x1c8] sm:$0xff]
      %v821 = vld [vmem:[#allocation2 + $0x1d0] sm:$0xff]
      %v822 = vld [vmem:[#allocation2 + $0x1d8] sm:$0xff]
      %v823 = vld [vmem:[#allocation2 + $0x1e0] sm:$0xff]
      %v824 = vld [vmem:[#allocation2 + $0x1e8] sm:$0xff]
      %v825 = vld [vmem:[#allocation2 + $0x1f0] sm:$0xff]
      %v826 = vld [vmem:[#allocation2 + $0x1f8] sm:$0xff]
      %v827 = vld [vmem:[#allocation2 + $0x200] sm:$0xff]
      %v828 = vld [vmem:[#allocation2 + $0x208] sm:$0xff]
      %v829 = vld [vmem:[#allocation2 + $0x210] sm:$0xff]
      %v830 = vld [vmem:[#allocation2 + $0x218] sm:$0xff]
      %v831 = vld [vmem:[#allocation2 + $0x220] sm:$0xff]
      %v832 = vld [vmem:[#allocation2 + $0x228] sm:$0xff]
      %v833 = vld [vmem:[#allocation2 + $0x230] sm:$0xff]
      %v834 = vld [vmem:[#allocation2 + $0x238] sm:$0xff]
      %v835 = vld [vmem:[#allocation2 + $0x240] sm:$0xff]
      %v836 = vld [vmem:[#allocation2 + $0x248] sm:$0xff]
      %v837 = vld [vmem:[#allocation2 + $0x250] sm:$0xff]
      %v838 = vld [vmem:[#allocation2 + $0x258] sm:$0xff]
      %v839 = vld [vmem:[#allocation2 + $0x260] sm:$0xff]
      %v840 = vld [vmem:[#allocation2 + $0x268] sm:$0xff]
      %v841 = vld [vmem:[#allocation2 + $0x270] sm:$0xff]
      %v842 = vld [vmem:[#allocation2 + $0x278] sm:$0xff]
      %v843 = vld [vmem:[#allocation2 + $0x280] sm:$0xff]
      %v844 = vld [vmem:[#allocation2 + $0x288] sm:$0xff]
      %v845 = vld [vmem:[#allocation2 + $0x290] sm:$0xff]
      %v846 = vld [vmem:[#allocation2 + $0x298] sm:$0xff]
      %v847 = vld [vmem:[#allocation2 + $0x2a0] sm:$0xff]
      %v848 = vld [vmem:[#allocation2 + $0x2a8] sm:$0xff]
      %v849 = vld [vmem:[#allocation2 + $0x2b0] sm:$0xff]
      %v850 = vld [vmem:[#allocation2 + $0x2b8] sm:$0xff]
      %v851 = vld [vmem:[#allocation2 + $0x2c0] sm:$0xff]
      %v852 = vld [vmem:[#allocation2 + $0x2c8] sm:$0xff]
      %v853 = vld [vmem:[#allocation2 + $0x2d0] sm:$0xff]
      %v854 = vld [vmem:[#allocation2 + $0x2d8] sm:$0xff]
      %v855 = vld [vmem:[#allocation2 + $0x2e0] sm:$0xff]
      %v856 = vld [vmem:[#allocation2 + $0x2e8] sm:$0xff]
      %v857 = vld [vmem:[#allocation2 + $0x2f0] sm:$0xff]
      %v858 = vld [vmem:[#allocation2 + $0x2f8] sm:$0xff]
      %v859 = vld [vmem:[#allocation2 + $0x300] sm:$0xff]
      %v860 = vld [vmem:[#allocation2 + $0x308] sm:$0xff]
      %v861 = vld [vmem:[#allocation2 + $0x310] sm:$0xff]
      %v862 = vld [vmem:[#allocation2 + $0x318] sm:$0xff]
      %v863 = vld [vmem:[#allocation2 + $0x320] sm:$0xff]
      %v864 = vld [vmem:[#allocation2 + $0x328] sm:$0xff]
      %v865 = vld [vmem:[#allocation2 + $0x330] sm:$0xff]
      %v866 = vld [vmem:[#allocation2 + $0x338] sm:$0xff]
      %v867 = vld [vmem:[#allocation2 + $0x340] sm:$0xff]
      %v868 = vld [vmem:[#allocation2 + $0x348] sm:$0xff]
      %v869 = vld [vmem:[#allocation2 + $0x350] sm:$0xff]
      %v870 = vld [vmem:[#allocation2 + $0x358] sm:$0xff]
      %v871 = vld [vmem:[#allocation2 + $0x360] sm:$0xff]
      %v872 = vld [vmem:[#allocation2 + $0x368] sm:$0xff]
      %v873 = vld [vmem:[#allocation2 + $0x370] sm:$0xff]
      %v874 = vld [vmem:[#allocation2 + $0x378] sm:$0xff]
      %v875 = vld [vmem:[#allocation2 + $0x380] sm:$0xff]
      %v876 = vld [vmem:[#allocation2 + $0x388] sm:$0xff]
      %v877 = vld [vmem:[#allocation2 + $0x390] sm:$0xff]
      %v878 = vld [vmem:[#allocation2 + $0x398] sm:$0xff]
      %v879 = vld [vmem:[#allocation2 + $0x3a0] sm:$0xff]
      %v880 = vld [vmem:[#allocation2 + $0x3a8] sm:$0xff]
      %v881 = vld [vmem:[#allocation2 + $0x3b0] sm:$0xff]
      %v882 = vld [vmem:[#allocation2 + $0x3b8] sm:$0xff]
      %v883 = vld [vmem:[#allocation2 + $0x3c0] sm:$0xff]
      %v884 = vld [vmem:[#allocation2 + $0x3c8] sm:$0xff]
      %v885 = vld [vmem:[#allocation2 + $0x3d0] sm:$0xff]
      %v886 = vld [vmem:[#allocation2 + $0x3d8] sm:$0xff]
      %v887 = vld [vmem:[#allocation2 + $0x3e0] sm:$0xff]
      %v888 = vld [vmem:[#allocation2 + $0x3e8] sm:$0xff]
      %v889 = vld [vmem:[#allocation2 + $0x3f0] sm:$0xff]
      %v890 = vld [vmem:[#allocation2 + $0x3f8] sm:$0xff]
      %v891 = vld [vmem:[#allocation2 + $0x400] sm:$0xff]
      %v892 = vld [vmem:[#allocation2 + $0x408] sm:$0xff]
      %v893 = vld [vmem:[#allocation2 + $0x410] sm:$0xff]
      %v894 = vld [vmem:[#allocation2 + $0x418] sm:$0xff]
      %v895 = vld [vmem:[#allocation2 + $0x420] sm:$0xff]
      %v896 = vld [vmem:[#allocation2 + $0x428] sm:$0xff]
      %v897 = vld [vmem:[#allocation2 + $0x430] sm:$0xff]
      %v898 = vld [vmem:[#allocation2 + $0x438] sm:$0xff]
      %v899 = vld [vmem:[#allocation2 + $0x440] sm:$0xff]
      %v900 = vld [vmem:[#allocation2 + $0x448] sm:$0xff]
      %v901 = vld [vmem:[#allocation2 + $0x450] sm:$0xff]
      %v902 = vld [vmem:[#allocation2 + $0x458] sm:$0xff]
      %v903 = vld [vmem:[#allocation2 + $0x460] sm:$0xff]
      %v904 = vld [vmem:[#allocation2 + $0x468] sm:$0xff]
      %v905 = vld [vmem:[#allocation2 + $0x470] sm:$0xff]
      %v906 = vld [vmem:[#allocation2 + $0x478] sm:$0xff]
      %v907 = vld [vmem:[#allocation2 + $0x480] sm:$0xff]
      %v908 = vld [vmem:[#allocation2 + $0x488] sm:$0xff]
      %v909 = vld [vmem:[#allocation2 + $0x490] sm:$0xff]
      %v910 = vld [vmem:[#allocation2 + $0x498] sm:$0xff]
      %v911 = vld [vmem:[#allocation2 + $0x4a0] sm:$0xff]
      %v912 = vld [vmem:[#allocation2 + $0x4a8] sm:$0xff]
      %v913 = vld [vmem:[#allocation2 + $0x4b0] sm:$0xff]
      %v914 = vld [vmem:[#allocation2 + $0x4b8] sm:$0xff]
      %v915 = vld [vmem:[#allocation2 + $0x4c0] sm:$0xff]
      %v916 = vld [vmem:[#allocation2 + $0x4c8] sm:$0xff]
      %v917 = vld [vmem:[#allocation2 + $0x4d0] sm:$0xff]
      %v918 = vld [vmem:[#allocation2 + $0x4d8] sm:$0xff]
      %v919 = vld [vmem:[#allocation2 + $0x4e0] sm:$0xff]
      %v920 = vld [vmem:[#allocation2 + $0x4e8] sm:$0xff]
      %v921 = vld [vmem:[#allocation2 + $0x4f0] sm:$0xff]
      %v922 = vld [vmem:[#allocation2 + $0x4f8] sm:$0xff]
      %v923 = vld [vmem:[#allocation2 + $0x500] sm:$0xff]
      %v924 = vld [vmem:[#allocation2 + $0x508] sm:$0xff]
      %v925 = vld [vmem:[#allocation2 + $0x510] sm:$0xff]
      %v926 = vld [vmem:[#allocation2 + $0x518] sm:$0xff]
      %v927 = vld [vmem:[#allocation2 + $0x520] sm:$0xff]
      %v928 = vld [vmem:[#allocation2 + $0x528] sm:$0xff]
      %v929 = vld [vmem:[#allocation2 + $0x530] sm:$0xff]
      %v930 = vld [vmem:[#allocation2 + $0x538] sm:$0xff]
      %v931 = vld [vmem:[#allocation2 + $0x540] sm:$0xff]
      %v932 = vld [vmem:[#allocation2 + $0x548] sm:$0xff]
      %v933 = vld [vmem:[#allocation2 + $0x550] sm:$0xff]
      %v934 = vld [vmem:[#allocation2 + $0x558] sm:$0xff]
      %v935 = vld [vmem:[#allocation2 + $0x560] sm:$0xff]
      %v936 = vld [vmem:[#allocation2 + $0x568] sm:$0xff]
      %v937 = vld [vmem:[#allocation2 + $0x570] sm:$0xff]
      %v938 = vld [vmem:[#allocation2 + $0x578] sm:$0xff]
      %v939 = vld [vmem:[#allocation2 + $0x580] sm:$0xff]
      %v940 = vld [vmem:[#allocation2 + $0x588] sm:$0xff]
      %v941 = vld [vmem:[#allocation2 + $0x590] sm:$0xff]
      %v942 = vld [vmem:[#allocation2 + $0x598] sm:$0xff]
      %v943 = vld [vmem:[#allocation2 + $0x5a0] sm:$0xff]
      %v944 = vld [vmem:[#allocation2 + $0x5a8] sm:$0xff]
      %v945 = vld [vmem:[#allocation2 + $0x5b0] sm:$0xff]
      %v946 = vld [vmem:[#allocation2 + $0x5b8] sm:$0xff]
      %v947 = vld [vmem:[#allocation2 + $0x5c0] sm:$0xff]
      %v948 = vld [vmem:[#allocation2 + $0x5c8] sm:$0xff]
      %v949 = vld [vmem:[#allocation2 + $0x5d0] sm:$0xff]
      %v950 = vld [vmem:[#allocation2 + $0x5d8] sm:$0xff]
      %v951 = vld [vmem:[#allocation2 + $0x5e0] sm:$0xff]
      %v952 = vld [vmem:[#allocation2 + $0x5e8] sm:$0xff]
      %v953 = vld [vmem:[#allocation2 + $0x5f0] sm:$0xff]
      %v954 = vld [vmem:[#allocation2 + $0x5f8] sm:$0xff]
      %v955 = vld [vmem:[#allocation2 + $0x600] sm:$0xff]
      %v956 = vld [vmem:[#allocation2 + $0x608] sm:$0xff]
      %v957 = vld [vmem:[#allocation2 + $0x610] sm:$0xff]
      %v958 = vld [vmem:[#allocation2 + $0x618] sm:$0xff]
      %v959 = vld [vmem:[#allocation2 + $0x620] sm:$0xff]
      %v960 = vld [vmem:[#allocation2 + $0x628] sm:$0xff]
      %v961 = vld [vmem:[#allocation2 + $0x630] sm:$0xff]
      %v962 = vld [vmem:[#allocation2 + $0x638] sm:$0xff]
      %v963 = vld [vmem:[#allocation2 + $0x640] sm:$0xff]
      %v964 = vld [vmem:[#allocation2 + $0x648] sm:$0xff]
      %v965 = vld [vmem:[#allocation2 + $0x650] sm:$0xff]
      %v966 = vld [vmem:[#allocation2 + $0x658] sm:$0xff]
      %v967 = vld [vmem:[#allocation2 + $0x660] sm:$0xff]
      %v968 = vld [vmem:[#allocation2 + $0x668] sm:$0xff]
      %v969 = vld [vmem:[#allocation2 + $0x670] sm:$0xff]
      %v970 = vld [vmem:[#allocation2 + $0x678] sm:$0xff]
      %v971 = vld [vmem:[#allocation2 + $0x680] sm:$0xff]
      %v972 = vld [vmem:[#allocation2 + $0x688] sm:$0xff]
      %v973 = vld [vmem:[#allocation2 + $0x690] sm:$0xff]
      %v974 = vld [vmem:[#allocation2 + $0x698] sm:$0xff]
      %v975 = vld [vmem:[#allocation2 + $0x6a0] sm:$0xff]
      %v976 = vld [vmem:[#allocation2 + $0x6a8] sm:$0xff]
      %v977 = vld [vmem:[#allocation2 + $0x6b0] sm:$0xff]
      %v978 = vld [vmem:[#allocation2 + $0x6b8] sm:$0xff]
      %v979 = vld [vmem:[#allocation2 + $0x6c0] sm:$0xff]
      %v980 = vld [vmem:[#allocation2 + $0x6c8] sm:$0xff]
      %v981 = vld [vmem:[#allocation2 + $0x6d0] sm:$0xff]
      %v982 = vld [vmem:[#allocation2 + $0x6d8] sm:$0xff]
      %v983 = vld [vmem:[#allocation2 + $0x6e0] sm:$0xff]
      %v984 = vld [vmem:[#allocation2 + $0x6e8] sm:$0xff]
      %v985 = vld [vmem:[#allocation2 + $0x6f0] sm:$0xff]
      %v986 = vld [vmem:[#allocation2 + $0x6f8] sm:$0xff]
      %v987 = vld [vmem:[#allocation2 + $0x700] sm:$0xff]
      %v988 = vld [vmem:[#allocation2 + $0x708] sm:$0xff]
      %v989 = vld [vmem:[#allocation2 + $0x710] sm:$0xff]
      %v990 = vld [vmem:[#allocation2 + $0x718] sm:$0xff]
      %v991 = vld [vmem:[#allocation2 + $0x720] sm:$0xff]
      %v992 = vld [vmem:[#allocation2 + $0x728] sm:$0xff]
      %v993 = vld [vmem:[#allocation2 + $0x730] sm:$0xff]
      %v994 = vld [vmem:[#allocation2 + $0x738] sm:$0xff]
      %v995 = vld [vmem:[#allocation2 + $0x740] sm:$0xff]
      %v996 = vld [vmem:[#allocation2 + $0x748] sm:$0xff]
      %v997 = vld [vmem:[#allocation2 + $0x750] sm:$0xff]
      %v998 = vld [vmem:[#allocation2 + $0x758] sm:$0xff]
      %v999 = vld [vmem:[#allocation2 + $0x760] sm:$0xff]
      %v1000 = vld [vmem:[#allocation2 + $0x768] sm:$0xff]
      %v1001 = vld [vmem:[#allocation2 + $0x770] sm:$0xff]
      %v1002 = vld [vmem:[#allocation2 + $0x778] sm:$0xff]
      %v1003 = vld [vmem:[#allocation2 + $0x780] sm:$0xff]
      %v1004 = vld [vmem:[#allocation2 + $0x788] sm:$0xff]
      %v1005 = vld [vmem:[#allocation2 + $0x790] sm:$0xff]
      %v1006 = vld [vmem:[#allocation2 + $0x798] sm:$0xff]
      %v1007 = vld [vmem:[#allocation2 + $0x7a0] sm:$0xff]
      %v1008 = vld [vmem:[#allocation2 + $0x7a8] sm:$0xff]
      %v1009 = vld [vmem:[#allocation2 + $0x7b0] sm:$0xff]
      %v1010 = vld [vmem:[#allocation2 + $0x7b8] sm:$0xff]
      %v1011 = vld [vmem:[#allocation2 + $0x7c0] sm:$0xff]
      %v1012 = vld [vmem:[#allocation2 + $0x7c8] sm:$0xff]
      %v1013 = vld [vmem:[#allocation2 + $0x7d0] sm:$0xff]
      %v1014 = vld [vmem:[#allocation2 + $0x7d8] sm:$0xff]
      %v1015 = vld [vmem:[#allocation2 + $0x7e0] sm:$0xff]
      %v1016 = vld [vmem:[#allocation2 + $0x7e8] sm:$0xff]
      %v1017 = vld [vmem:[#allocation2 + $0x7f0] sm:$0xff]
      %v1018 = vld [vmem:[#allocation2 + $0x7f8] sm:$0xff]
      %v1019 = vld [vmem:[#allocation2 + $0x800] sm:$0xff]
      %v1020 = vld [vmem:[#allocation2 + $0x808] sm:$0xff]
      %v1021 = vld [vmem:[#allocation2 + $0x810] sm:$0xff]
      %v1022 = vld [vmem:[#allocation2 + $0x818] sm:$0xff]
      %v1023 = vld [vmem:[#allocation2 + $0x820] sm:$0xff]
      %v1024 = vld [vmem:[#allocation2 + $0x828] sm:$0xff]
      %v1025 = vld [vmem:[#allocation2 + $0x830] sm:$0xff]
      %v1026 = vld [vmem:[#allocation2 + $0x838] sm:$0xff]
      %v1027 = vld [vmem:[#allocation2 + $0x840] sm:$0xff]
      %v1028 = vld [vmem:[#allocation2 + $0x848] sm:$0xff]
      %v1029 = vld [vmem:[#allocation2 + $0x850] sm:$0xff]
      %v1030 = vld [vmem:[#allocation2 + $0x858] sm:$0xff]
      %v1031 = vld [vmem:[#allocation2 + $0x860] sm:$0xff]
      %v1032 = vld [vmem:[#allocation2 + $0x868] sm:$0xff]
      %v1033 = vld [vmem:[#allocation2 + $0x870] sm:$0xff]
      %v1034 = vld [vmem:[#allocation2 + $0x878] sm:$0xff]
      %v1035 = vld [vmem:[#allocation2 + $0x880] sm:$0xff]
      %v1036 = vld [vmem:[#allocation2 + $0x888] sm:$0xff]
      %v1037 = vld [vmem:[#allocation2 + $0x890] sm:$0xff]
      %v1038 = vld [vmem:[#allocation2 + $0x898] sm:$0xff]
      %v1039 = vld [vmem:[#allocation2 + $0x8a0] sm:$0xff]
      %v1040 = vld [vmem:[#allocation2 + $0x8a8] sm:$0xff]
      %v1041 = vld [vmem:[#allocation2 + $0x8b0] sm:$0xff]
      %v1042 = vld [vmem:[#allocation2 + $0x8b8] sm:$0xff]
      %v1043 = vld [vmem:[#allocation2 + $0x8c0] sm:$0xff]
      %v1044 = vld [vmem:[#allocation2 + $0x8c8] sm:$0xff]
      %v1045 = vld [vmem:[#allocation2 + $0x8d0] sm:$0xff]
      %v1046 = vld [vmem:[#allocation2 + $0x8d8] sm:$0xff]
      %v1047 = vld [vmem:[#allocation2 + $0x8e0] sm:$0xff]
      %v1048 = vld [vmem:[#allocation2 + $0x8e8] sm:$0xff]
      %v1049 = vld [vmem:[#allocation2 + $0x8f0] sm:$0xff]
      %v1050 = vld [vmem:[#allocation2 + $0x8f8] sm:$0xff]
      %v1051 = vld [vmem:[%s172] sm:$0xff]
      %v1052 = vld [vmem:[%s172 + $0x8] sm:$0xff]
      %v1053 = vld [vmem:[%s172 + $0x10] sm:$0xff]
      %v1054 = vld [vmem:[%s172 + $0x18] sm:$0xff]
      %v1055 = vld [vmem:[%s172 + $0x20] sm:$0xff]
      %v1056 = vld [vmem:[%s172 + $0x28] sm:$0xff]
      %v1057 = vld [vmem:[%s172 + $0x30] sm:$0xff]
      %v1058 = vld [vmem:[%s172 + $0x38] sm:$0xff]
      %v1059 = vld [vmem:[%s172 + $0x40] sm:$0xff]
      %v1060 = vld [vmem:[%s172 + $0x48] sm:$0xff]
      %v1061 = vld [vmem:[%s172 + $0x50] sm:$0xff]
      %v1062 = vld [vmem:[%s172 + $0x58] sm:$0xff]
      %v1063 = vld [vmem:[%s172 + $0x60] sm:$0xff]
      %v1064 = vld [vmem:[%s172 + $0x68] sm:$0xff]
      %v1065 = vld [vmem:[%s172 + $0x70] sm:$0xff]
      %v1066 = vld [vmem:[%s172 + $0x78] sm:$0xff]
      %v1067 = vld [vmem:[%s172 + $0x80] sm:$0xff]
      %v1068 = vld [vmem:[%s172 + $0x88] sm:$0xff]
      %v1069 = vld [vmem:[%s172 + $0x90] sm:$0xff]
      %v1070 = vld [vmem:[%s172 + $0x98] sm:$0xff]
      %v1071 = vld [vmem:[%s172 + $0xa0] sm:$0xff]
      %v1072 = vld [vmem:[%s172 + $0xa8] sm:$0xff]
      %v1073 = vld [vmem:[%s172 + $0xb0] sm:$0xff]
      %v1074 = vld [vmem:[%s172 + $0xb8] sm:$0xff]
      %v1075 = vld [vmem:[%s172 + $0xc0] sm:$0xff]
      %v1076 = vld [vmem:[%s172 + $0xc8] sm:$0xff]
      %v1077 = vld [vmem:[%s172 + $0xd0] sm:$0xff]
      %v1078 = vld [vmem:[%s172 + $0xd8] sm:$0xff]
      %v1079 = vld [vmem:[%s172 + $0xe0] sm:$0xff]
      %v1080 = vld [vmem:[%s172 + $0xe8] sm:$0xff]
      %v1081 = vld [vmem:[%s172 + $0xf0] sm:$0xff]
      %v1082 = vld [vmem:[%s172 + $0xf8] sm:$0xff]
      %v1083 = vld [vmem:[%s172 + $0x100] sm:$0xff]
      %v1084 = vld [vmem:[%s172 + $0x108] sm:$0xff]
      %v1085 = vld [vmem:[%s172 + $0x110] sm:$0xff]
      %v1086 = vld [vmem:[%s172 + $0x118] sm:$0xff]
      %v1087 = vld [vmem:[%s172 + $0x120] sm:$0xff]
      %v1088 = vld [vmem:[%s172 + $0x128] sm:$0xff]
      %v1089 = vld [vmem:[%s172 + $0x130] sm:$0xff]
      %v1090 = vld [vmem:[%s172 + $0x138] sm:$0xff]
      %v1091 = vld [vmem:[%s172 + $0x140] sm:$0xff]
      %v1092 = vld [vmem:[%s172 + $0x148] sm:$0xff]
      %v1093 = vld [vmem:[%s172 + $0x150] sm:$0xff]
      %v1094 = vld [vmem:[%s172 + $0x158] sm:$0xff]
      %v1095 = vld [vmem:[%s172 + $0x160] sm:$0xff]
      %v1096 = vld [vmem:[%s172 + $0x168] sm:$0xff]
      %v1097 = vld [vmem:[%s172 + $0x170] sm:$0xff]
      %v1098 = vld [vmem:[%s172 + $0x178] sm:$0xff]
      %v1099 = vld [vmem:[%s172 + $0x180] sm:$0xff]
      %v1100 = vld [vmem:[%s172 + $0x188] sm:$0xff]
      %v1101 = vld [vmem:[%s172 + $0x190] sm:$0xff]
      %v1102 = vld [vmem:[%s172 + $0x198] sm:$0xff]
      %v1103 = vld [vmem:[%s172 + $0x1a0] sm:$0xff]
      %v1104 = vld [vmem:[%s172 + $0x1a8] sm:$0xff]
      %v1105 = vld [vmem:[%s172 + $0x1b0] sm:$0xff]
      %v1106 = vld [vmem:[%s172 + $0x1b8] sm:$0xff]
      %v1107 = vld [vmem:[%s172 + $0x1c0] sm:$0xff]
      %v1108 = vld [vmem:[%s172 + $0x1c8] sm:$0xff]
      %v1109 = vld [vmem:[%s172 + $0x1d0] sm:$0xff]
      %v1110 = vld [vmem:[%s172 + $0x1d8] sm:$0xff]
      %v1111 = vld [vmem:[%s172 + $0x1e0] sm:$0xff]
      %v1112 = vld [vmem:[%s172 + $0x1e8] sm:$0xff]
      %v1113 = vld [vmem:[%s172 + $0x1f0] sm:$0xff]
      %v1114 = vld [vmem:[%s172 + $0x1f8] sm:$0xff]
      %v1115 = vld [vmem:[%s172 + $0x200] sm:$0xff]
      %v1116 = vld [vmem:[%s172 + $0x208] sm:$0xff]
      %v1117 = vld [vmem:[%s172 + $0x210] sm:$0xff]
      %v1118 = vld [vmem:[%s172 + $0x218] sm:$0xff]
      %v1119 = vld [vmem:[%s172 + $0x220] sm:$0xff]
      %v1120 = vld [vmem:[%s172 + $0x228] sm:$0xff]
      %v1121 = vld [vmem:[%s172 + $0x230] sm:$0xff]
      %v1122 = vld [vmem:[%s172 + $0x238] sm:$0xff]
      %v1123 = vld [vmem:[%s172 + $0x240] sm:$0xff]
      %v1124 = vld [vmem:[%s172 + $0x248] sm:$0xff]
      %v1125 = vld [vmem:[%s172 + $0x250] sm:$0xff]
      %v1126 = vld [vmem:[%s172 + $0x258] sm:$0xff]
      %v1127 = vld [vmem:[%s172 + $0x260] sm:$0xff]
      %v1128 = vld [vmem:[%s172 + $0x268] sm:$0xff]
      %v1129 = vld [vmem:[%s172 + $0x270] sm:$0xff]
      %v1130 = vld [vmem:[%s172 + $0x278] sm:$0xff]
      %v1131 = vld [vmem:[%s172 + $0x280] sm:$0xff]
      %v1132 = vld [vmem:[%s172 + $0x288] sm:$0xff]
      %v1133 = vld [vmem:[%s172 + $0x290] sm:$0xff]
      %v1134 = vld [vmem:[%s172 + $0x298] sm:$0xff]
      %v1135 = vld [vmem:[%s172 + $0x2a0] sm:$0xff]
      %v1136 = vld [vmem:[%s172 + $0x2a8] sm:$0xff]
      %v1137 = vld [vmem:[%s172 + $0x2b0] sm:$0xff]
      %v1138 = vld [vmem:[%s172 + $0x2b8] sm:$0xff]
      %v1139 = vld [vmem:[%s172 + $0x2c0] sm:$0xff]
      %v1140 = vld [vmem:[%s172 + $0x2c8] sm:$0xff]
      %v1141 = vld [vmem:[%s172 + $0x2d0] sm:$0xff]
      %v1142 = vld [vmem:[%s172 + $0x2d8] sm:$0xff]
      %v1143 = vld [vmem:[%s172 + $0x2e0] sm:$0xff]
      %v1144 = vld [vmem:[%s172 + $0x2e8] sm:$0xff]
      %v1145 = vld [vmem:[%s172 + $0x2f0] sm:$0xff]
      %v1146 = vld [vmem:[%s172 + $0x2f8] sm:$0xff]
      %v1147 = vld [vmem:[%s172 + $0x300] sm:$0xff]
      %v1148 = vld [vmem:[%s172 + $0x308] sm:$0xff]
      %v1149 = vld [vmem:[%s172 + $0x310] sm:$0xff]
      %v1150 = vld [vmem:[%s172 + $0x318] sm:$0xff]
      %v1151 = vld [vmem:[%s172 + $0x320] sm:$0xff]
      %v1152 = vld [vmem:[%s172 + $0x328] sm:$0xff]
      %v1153 = vld [vmem:[%s172 + $0x330] sm:$0xff]
      %v1154 = vld [vmem:[%s172 + $0x338] sm:$0xff]
      %v1155 = vld [vmem:[%s172 + $0x340] sm:$0xff]
      %v1156 = vld [vmem:[%s172 + $0x348] sm:$0xff]
      %v1157 = vld [vmem:[%s172 + $0x350] sm:$0xff]
      %v1158 = vld [vmem:[%s172 + $0x358] sm:$0xff]
      %v1159 = vld [vmem:[%s172 + $0x360] sm:$0xff]
      %v1160 = vld [vmem:[%s172 + $0x368] sm:$0xff]
      %v1161 = vld [vmem:[%s172 + $0x370] sm:$0xff]
      %v1162 = vld [vmem:[%s172 + $0x378] sm:$0xff]
      %v1163 = vld [vmem:[%s172 + $0x380] sm:$0xff]
      %v1164 = vld [vmem:[%s172 + $0x388] sm:$0xff]
      %v1165 = vld [vmem:[%s172 + $0x390] sm:$0xff]
      %v1166 = vld [vmem:[%s172 + $0x398] sm:$0xff]
      %v1167 = vld [vmem:[%s172 + $0x3a0] sm:$0xff]
      %v1168 = vld [vmem:[%s172 + $0x3a8] sm:$0xff]
      %v1169 = vld [vmem:[%s172 + $0x3b0] sm:$0xff]
      %v1170 = vld [vmem:[%s172 + $0x3b8] sm:$0xff]
      %v1171 = vld [vmem:[%s172 + $0x3c0] sm:$0xff]
      %v1172 = vld [vmem:[%s172 + $0x3c8] sm:$0xff]
      %v1173 = vld [vmem:[%s172 + $0x3d0] sm:$0xff]
      %v1174 = vld [vmem:[%s172 + $0x3d8] sm:$0xff]
      %v1175 = vld [vmem:[%s172 + $0x3e0] sm:$0xff]
      %v1176 = vld [vmem:[%s172 + $0x3e8] sm:$0xff]
      %v1177 = vld [vmem:[%s172 + $0x3f0] sm:$0xff]
      %v1178 = vld [vmem:[%s172 + $0x3f8] sm:$0xff]
      %v1179 = vld [vmem:[%s172 + $0x400] sm:$0xff]
      %v1180 = vld [vmem:[%s172 + $0x408] sm:$0xff]
      %v1181 = vld [vmem:[%s172 + $0x410] sm:$0xff]
      %v1182 = vld [vmem:[%s172 + $0x418] sm:$0xff]
      %v1183 = vld [vmem:[%s172 + $0x420] sm:$0xff]
      %v1184 = vld [vmem:[%s172 + $0x428] sm:$0xff]
      %v1185 = vld [vmem:[%s172 + $0x430] sm:$0xff]
      %v1186 = vld [vmem:[%s172 + $0x438] sm:$0xff]
      %v1187 = vld [vmem:[%s172 + $0x440] sm:$0xff]
      %v1188 = vld [vmem:[%s172 + $0x448] sm:$0xff]
      %v1189 = vld [vmem:[%s172 + $0x450] sm:$0xff]
      %v1190 = vld [vmem:[%s172 + $0x458] sm:$0xff]
      %v1191 = vld [vmem:[%s172 + $0x460] sm:$0xff]
      %v1192 = vld [vmem:[%s172 + $0x468] sm:$0xff]
      %v1193 = vld [vmem:[%s172 + $0x470] sm:$0xff]
      %v1194 = vld [vmem:[%s172 + $0x478] sm:$0xff]
      %1195 = vmatprep.subr.mxu0 0.0
      %1196 = vmatpush1.msra.mxu0 %v1066
      %1197 = vmatprep.subr.mxu0 0.0
      %1198 = vmatpush1.msra.mxu0 %v1065
      %1199 = vmatprep.subr.mxu0 0.0
      %1200 = vmatpush1.msra.mxu0 %v1064
      %1201 = vmatprep.subr.mxu0 0.0
      %1202 = vmatpush1.msra.mxu0 %v1063
      %1203 = vmatprep.subr.mxu0 0.0
      %1204 = vmatpush1.msra.mxu0 %v1062
      %1205 = vmatprep.subr.mxu0 0.0
      %1206 = vmatpush1.msra.mxu0 %v1061
      %1207 = vmatprep.subr.mxu0 0.0
      %1208 = vmatpush1.msra.mxu0 %v1060
      %1209 = vmatprep.subr.mxu0 0.0
      %1210 = vmatpush1.msra.mxu0 %v1059
      %1211 = vmatprep.subr.mxu0 0.0
      %1212 = vmatpush1.msra.mxu0 %v1058
      %1213 = vmatprep.subr.mxu0 0.0
      %1214 = vmatpush1.msra.mxu0 %v1057
      %1215 = vmatprep.subr.mxu0 0.0
      %1216 = vmatpush1.msra.mxu0 %v1056
      %1217 = vmatprep.subr.mxu0 0.0
      %1218 = vmatpush1.msra.mxu0 %v1055
      %1219 = vmatprep.subr.mxu0 0.0
      %1220 = vmatpush1.msra.mxu0 %v1054
      %1221 = vmatprep.subr.mxu0 0.0
      %1222 = vmatpush1.msra.mxu0 %v1053
      %1223 = vmatprep.subr.mxu0 0.0
      %1224 = vmatpush1.msra.mxu0 %v1052
      %1225 = vmatprep.subr.mxu0 0.0
      %1226 = vmatpush1.msra.mxu0 %v1051
      %1227 = vmatprep.subr.mxu0 0.0
      %1228 = vmatpush2.msra.mxu0 %v1082
      %1229 = vmatprep.subr.mxu0 0.0
      %1230 = vmatpush2.msra.mxu0 %v1081
      %1231 = vmatprep.subr.mxu0 0.0
      %1232 = vmatpush2.msra.mxu0 %v1080
      %1233 = vmatprep.subr.mxu0 0.0
      %1234 = vmatpush2.msra.mxu0 %v1079
      %1235 = vmatprep.subr.mxu0 0.0
      %1236 = vmatpush2.msra.mxu0 %v1078
      %1237 = vmatprep.subr.mxu0 0.0
      %1238 = vmatpush2.msra.mxu0 %v1077
      %1239 = vmatprep.subr.mxu0 0.0
      %1240 = vmatpush2.msra.mxu0 %v1076
      %1241 = vmatprep.subr.mxu0 0.0
      %1242 = vmatpush2.msra.mxu0 %v1075
      %1243 = vmatprep.subr.mxu0 0.0
      %1244 = vmatpush2.msra.mxu0 %v1074
      %1245 = vmatprep.subr.mxu0 0.0
      %1246 = vmatpush2.msra.mxu0 %v1073
      %1247 = vmatprep.subr.mxu0 0.0
      %1248 = vmatpush2.msra.mxu0 %v1072
      %1249 = vmatprep.subr.mxu0 0.0
      %1250 = vmatpush2.msra.mxu0 %v1071
      %1251 = vmatprep.subr.mxu0 0.0
      %1252 = vmatpush2.msra.mxu0 %v1070
      %1253 = vmatprep.subr.mxu0 0.0
      %1254 = vmatpush2.msra.mxu0 %v1069
      %1255 = vmatprep.subr.mxu0 0.0
      %1256 = vmatpush2.msra.mxu0 %v1068
      %1257 = vmatprep.subr.mxu0 0.0
      %1258 = vmatpush2.msra.mxu0 %v1067
      %1259 = vmatprep.mubr.f32.mxu0 %v764
      %1260 = vmatmul.mubr.f32.gmra.mxu0 %v763
      %v1261 = vpop.f32.mrf.mxu0
      %v1262 = vadd.f32 0.0, %v1261
      %v1263 = vpop.f32.mrf.mxu0
      %1264 = vmatprep.mubr.f32.mxu0 %v773
      %1265 = vmatmul.mubr.f32.gmra.mxu0 %v772
      %v1266 = vpop.f32.mrf.mxu0
      %v1267 = vadd.f32 0.0, %v1266
      %v1268 = vpop.f32.mrf.mxu0
      %1269 = vmatprep.mubr.f32.mxu0 %v782
      %1270 = vmatmul.mubr.f32.gmra.mxu0 %v781
      %v1271 = vpop.f32.mrf.mxu0
      %v1272 = vadd.f32 0.0, %v1271
      %v1273 = vpop.f32.mrf.mxu0
      %1274 = vmatprep.mubr.f32.mxu0 %v791
      %1275 = vmatmul.mubr.f32.gmra.mxu0 %v790
      %v1276 = vpop.f32.mrf.mxu0
      %v1277 = vadd.f32 0.0, %v1276
      %v1278 = vpop.f32.mrf.mxu0
      %1279 = vmatprep.mubr.f32.mxu0 %v800
      %1280 = vmatmul.mubr.f32.gmra.mxu0 %v799
      %v1281 = vpop.f32.mrf.mxu0
      %v1282 = vadd.f32 0.0, %v1281
      %v1283 = vpop.f32.mrf.mxu0
      %1284 = vmatprep.mubr.f32.mxu0 %v809
      %1285 = vmatmul.mubr.f32.gmra.mxu0 %v808
      %v1286 = vpop.f32.mrf.mxu0
      %v1287 = vadd.f32 0.0, %v1286
      %v1288 = vpop.f32.mrf.mxu0
      %1289 = vmatprep.mubr.f32.mxu0 %v818
      %1290 = vmatmul.mubr.f32.gmra.mxu0 %v817
      %v1291 = vpop.f32.mrf.mxu0
      %v1292 = vadd.f32 0.0, %v1291
      %v1293 = vpop.f32.mrf.mxu0
      %1294 = vmatprep.mubr.f32.mxu0 %v827
      %1295 = vmatmul.mubr.f32.gmra.mxu0 %v826
      %v1296 = vpop.f32.mrf.mxu0
      %v1297 = vadd.f32 0.0, %v1296
      %v1298 = vpop.f32.mrf.mxu0
      %1299 = vmatprep.mubr.f32.mxu0 %v836
      %1300 = vmatmul.mubr.f32.gmra.mxu0 %v835
      %v1301 = vpop.f32.mrf.mxu0
      %v1302 = vadd.f32 0.0, %v1301
      %v1303 = vpop.f32.mrf.mxu0
      %1304 = vmatprep.mubr.f32.mxu0 %v845
      %1305 = vmatmul.mubr.f32.gmra.mxu0 %v844
      %v1306 = vpop.f32.mrf.mxu0
      %v1307 = vadd.f32 0.0, %v1306
      %v1308 = vpop.f32.mrf.mxu0
      %1309 = vmatprep.mubr.f32.mxu0 %v854
      %1310 = vmatmul.mubr.f32.gmra.mxu0 %v853
      %v1311 = vpop.f32.mrf.mxu0
      %v1312 = vadd.f32 0.0, %v1311
      %v1313 = vpop.f32.mrf.mxu0
      %1314 = vmatprep.mubr.f32.mxu0 %v863
      %1315 = vmatmul.mubr.f32.gmra.mxu0 %v862
      %v1316 = vpop.f32.mrf.mxu0
      %v1317 = vadd.f32 0.0, %v1316
      %v1318 = vpop.f32.mrf.mxu0
      %1319 = vmatprep.mubr.f32.mxu0 %v872
      %1320 = vmatmul.mubr.f32.gmra.mxu0 %v871
      %v1321 = vpop.f32.mrf.mxu0
      %v1322 = vadd.f32 0.0, %v1321
      %v1323 = vpop.f32.mrf.mxu0
      %1324 = vmatprep.mubr.f32.mxu0 %v881
      %1325 = vmatmul.mubr.f32.gmra.mxu0 %v880
      %v1326 = vpop.f32.mrf.mxu0
      %v1327 = vadd.f32 0.0, %v1326
      %v1328 = vpop.f32.mrf.mxu0
      %1329 = vmatprep.mubr.f32.mxu0 %v890
      %1330 = vmatmul.mubr.f32.gmra.mxu0 %v889
      %v1331 = vpop.f32.mrf.mxu0
      %v1332 = vadd.f32 0.0, %v1331
      %v1333 = vpop.f32.mrf.mxu0
      %1334 = vmatprep.mubr.f32.mxu0 %v899
      %1335 = vmatmul.mubr.f32.gmra.mxu0 %v898
      %v1336 = vpop.f32.mrf.mxu0
      %v1337 = vadd.f32 0.0, %v1336
      %v1338 = vpop.f32.mrf.mxu0
      %1339 = vmatprep.mubr.f32.mxu0 %v908
      %1340 = vmatmul.mubr.f32.gmra.mxu0 %v907
      %v1341 = vpop.f32.mrf.mxu0
      %v1342 = vadd.f32 0.0, %v1341
      %v1343 = vpop.f32.mrf.mxu0
      %1344 = vmatprep.mubr.f32.mxu0 %v917
      %1345 = vmatmul.mubr.f32.gmra.mxu0 %v916
      %v1346 = vpop.f32.mrf.mxu0
      %v1347 = vadd.f32 0.0, %v1346
      %v1348 = vpop.f32.mrf.mxu0
      %1349 = vmatprep.mubr.f32.mxu0 %v926
      %1350 = vmatmul.mubr.f32.gmra.mxu0 %v925
      %v1351 = vpop.f32.mrf.mxu0
      %v1352 = vadd.f32 0.0, %v1351
      %v1353 = vpop.f32.mrf.mxu0
      %1354 = vmatprep.mubr.f32.mxu0 %v935
      %1355 = vmatmul.mubr.f32.gmra.mxu0 %v934
      %v1356 = vpop.f32.mrf.mxu0
      %v1357 = vadd.f32 0.0, %v1356
      %v1358 = vpop.f32.mrf.mxu0
      %1359 = vmatprep.mubr.f32.mxu0 %v944
      %1360 = vmatmul.mubr.f32.gmra.mxu0 %v943
      %v1361 = vpop.f32.mrf.mxu0
      %v1362 = vadd.f32 0.0, %v1361
      %v1363 = vpop.f32.mrf.mxu0
      %1364 = vmatprep.mubr.f32.mxu0 %v953
      %1365 = vmatmul.mubr.f32.gmra.mxu0 %v952
      %v1366 = vpop.f32.mrf.mxu0
      %v1367 = vadd.f32 0.0, %v1366
      %v1368 = vpop.f32.mrf.mxu0
      %1369 = vmatprep.mubr.f32.mxu0 %v962
      %1370 = vmatmul.mubr.f32.gmra.mxu0 %v961
      %v1371 = vpop.f32.mrf.mxu0
      %v1372 = vadd.f32 0.0, %v1371
      %v1373 = vpop.f32.mrf.mxu0
      %1374 = vmatprep.mubr.f32.mxu0 %v971
      %1375 = vmatmul.mubr.f32.gmra.mxu0 %v970
      %v1376 = vpop.f32.mrf.mxu0
      %v1377 = vadd.f32 0.0, %v1376
      %v1378 = vpop.f32.mrf.mxu0
      %1379 = vmatprep.mubr.f32.mxu0 %v980
      %1380 = vmatmul.mubr.f32.gmra.mxu0 %v979
      %v1381 = vpop.f32.mrf.mxu0
      %v1382 = vadd.f32 0.0, %v1381
      %v1383 = vpop.f32.mrf.mxu0
      %1384 = vmatprep.mubr.f32.mxu0 %v989
      %1385 = vmatmul.mubr.f32.gmra.mxu0 %v988
      %v1386 = vpop.f32.mrf.mxu0
      %v1387 = vadd.f32 0.0, %v1386
      %v1388 = vpop.f32.mrf.mxu0
      %1389 = vmatprep.mubr.f32.mxu0 %v998
      %1390 = vmatmul.mubr.f32.gmra.mxu0 %v997
      %v1391 = vpop.f32.mrf.mxu0
      %v1392 = vadd.f32 0.0, %v1391
      %v1393 = vpop.f32.mrf.mxu0
      %1394 = vmatprep.mubr.f32.mxu0 %v1007
      %1395 = vmatmul.mubr.f32.gmra.mxu0 %v1006
      %v1396 = vpop.f32.mrf.mxu0
      %v1397 = vadd.f32 0.0, %v1396
      %v1398 = vpop.f32.mrf.mxu0
      %1399 = vmatprep.mubr.f32.mxu0 %v1016
      %1400 = vmatmul.mubr.f32.gmra.mxu0 %v1015
      %v1401 = vpop.f32.mrf.mxu0
      %v1402 = vadd.f32 0.0, %v1401
      %v1403 = vpop.f32.mrf.mxu0
      %1404 = vmatprep.mubr.f32.mxu0 %v1025
      %1405 = vmatmul.mubr.f32.gmra.mxu0 %v1024
      %v1406 = vpop.f32.mrf.mxu0
      %v1407 = vadd.f32 0.0, %v1406
      %v1408 = vpop.f32.mrf.mxu0
      %1409 = vmatprep.mubr.f32.mxu0 %v1034
      %1410 = vmatmul.mubr.f32.gmra.mxu0 %v1033
      %v1411 = vpop.f32.mrf.mxu0
      %v1412 = vadd.f32 0.0, %v1411
      %v1413 = vpop.f32.mrf.mxu0
      %1414 = vmatprep.mubr.f32.mxu0 %v1043
      %1415 = vmatmul.mubr.f32.gmra.mxu0 %v1042
      %v1416 = vpop.f32.mrf.mxu0
      %v1417 = vadd.f32 0.0, %v1416
      %v1418 = vpop.f32.mrf.mxu0
      %1419 = vdwg.mxu0
      %1420 = vmatprep.subr.mxu0 0.0
      %1421 = vmatpush1.msra.mxu0 %v1098
      %1422 = vmatprep.subr.mxu0 0.0
      %1423 = vmatpush1.msra.mxu0 %v1097
      %1424 = vmatprep.subr.mxu0 0.0
      %1425 = vmatpush1.msra.mxu0 %v1096
      %1426 = vmatprep.subr.mxu0 0.0
      %1427 = vmatpush1.msra.mxu0 %v1095
      %1428 = vmatprep.subr.mxu0 0.0
      %1429 = vmatpush1.msra.mxu0 %v1094
      %1430 = vmatprep.subr.mxu0 0.0
      %1431 = vmatpush1.msra.mxu0 %v1093
      %1432 = vmatprep.subr.mxu0 0.0
      %1433 = vmatpush1.msra.mxu0 %v1092
      %1434 = vmatprep.subr.mxu0 0.0
      %1435 = vmatpush1.msra.mxu0 %v1091
      %1436 = vmatprep.subr.mxu0 0.0
      %1437 = vmatpush1.msra.mxu0 %v1090
      %1438 = vmatprep.subr.mxu0 0.0
      %1439 = vmatpush1.msra.mxu0 %v1089
      %1440 = vmatprep.subr.mxu0 0.0
      %1441 = vmatpush1.msra.mxu0 %v1088
      %1442 = vmatprep.subr.mxu0 0.0
      %1443 = vmatpush1.msra.mxu0 %v1087
      %1444 = vmatprep.subr.mxu0 0.0
      %1445 = vmatpush1.msra.mxu0 %v1086
      %1446 = vmatprep.subr.mxu0 0.0
      %1447 = vmatpush1.msra.mxu0 %v1085
      %1448 = vmatprep.subr.mxu0 0.0
      %1449 = vmatpush1.msra.mxu0 %v1084
      %1450 = vmatprep.subr.mxu0 0.0
      %1451 = vmatpush1.msra.mxu0 %v1083
      %1452 = vmatprep.subr.mxu0 0.0
      %1453 = vmatpush2.msra.mxu0 %v1114
      %1454 = vmatprep.subr.mxu0 0.0
      %1455 = vmatpush2.msra.mxu0 %v1113
      %1456 = vmatprep.subr.mxu0 0.0
      %1457 = vmatpush2.msra.mxu0 %v1112
      %1458 = vmatprep.subr.mxu0 0.0
      %1459 = vmatpush2.msra.mxu0 %v1111
      %1460 = vmatprep.subr.mxu0 0.0
      %1461 = vmatpush2.msra.mxu0 %v1110
      %1462 = vmatprep.subr.mxu0 0.0
      %1463 = vmatpush2.msra.mxu0 %v1109
      %1464 = vmatprep.subr.mxu0 0.0
      %1465 = vmatpush2.msra.mxu0 %v1108
      %1466 = vmatprep.subr.mxu0 0.0
      %1467 = vmatpush2.msra.mxu0 %v1107
      %1468 = vmatprep.subr.mxu0 0.0
      %1469 = vmatpush2.msra.mxu0 %v1106
      %1470 = vmatprep.subr.mxu0 0.0
      %1471 = vmatpush2.msra.mxu0 %v1105
      %1472 = vmatprep.subr.mxu0 0.0
      %1473 = vmatpush2.msra.mxu0 %v1104
      %1474 = vmatprep.subr.mxu0 0.0
      %1475 = vmatpush2.msra.mxu0 %v1103
      %1476 = vmatprep.subr.mxu0 0.0
      %1477 = vmatpush2.msra.mxu0 %v1102
      %1478 = vmatprep.subr.mxu0 0.0
      %1479 = vmatpush2.msra.mxu0 %v1101
      %1480 = vmatprep.subr.mxu0 0.0
      %1481 = vmatpush2.msra.mxu0 %v1100
      %1482 = vmatprep.subr.mxu0 0.0
      %1483 = vmatpush2.msra.mxu0 %v1099
      %1484 = vmatprep.mubr.f32.mxu0 %v766
      %1485 = vmatmul.mubr.f32.gmra.mxu0 %v765
      %v1486 = vpop.f32.mrf.mxu0
      %v1487 = vadd.f32 %v1262, %v1486
      %v1488 = vpop.f32.mrf.mxu0
      %1489 = vmatprep.mubr.f32.mxu0 %v775
      %1490 = vmatmul.mubr.f32.gmra.mxu0 %v774
      %v1491 = vpop.f32.mrf.mxu0
      %v1492 = vadd.f32 %v1267, %v1491
      %v1493 = vpop.f32.mrf.mxu0
      %1494 = vmatprep.mubr.f32.mxu0 %v784
      %1495 = vmatmul.mubr.f32.gmra.mxu0 %v783
      %v1496 = vpop.f32.mrf.mxu0
      %v1497 = vadd.f32 %v1272, %v1496
      %v1498 = vpop.f32.mrf.mxu0
      %1499 = vmatprep.mubr.f32.mxu0 %v793
      %1500 = vmatmul.mubr.f32.gmra.mxu0 %v792
      %v1501 = vpop.f32.mrf.mxu0
      %v1502 = vadd.f32 %v1277, %v1501
      %v1503 = vpop.f32.mrf.mxu0
      %1504 = vmatprep.mubr.f32.mxu0 %v802
      %1505 = vmatmul.mubr.f32.gmra.mxu0 %v801
      %v1506 = vpop.f32.mrf.mxu0
      %v1507 = vadd.f32 %v1282, %v1506
      %v1508 = vpop.f32.mrf.mxu0
      %1509 = vmatprep.mubr.f32.mxu0 %v811
      %1510 = vmatmul.mubr.f32.gmra.mxu0 %v810
      %v1511 = vpop.f32.mrf.mxu0
      %v1512 = vadd.f32 %v1287, %v1511
      %v1513 = vpop.f32.mrf.mxu0
      %1514 = vmatprep.mubr.f32.mxu0 %v820
      %1515 = vmatmul.mubr.f32.gmra.mxu0 %v819
      %v1516 = vpop.f32.mrf.mxu0
      %v1517 = vadd.f32 %v1292, %v1516
      %v1518 = vpop.f32.mrf.mxu0
      %1519 = vmatprep.mubr.f32.mxu0 %v829
      %1520 = vmatmul.mubr.f32.gmra.mxu0 %v828
      %v1521 = vpop.f32.mrf.mxu0
      %v1522 = vadd.f32 %v1297, %v1521
      %v1523 = vpop.f32.mrf.mxu0
      %1524 = vmatprep.mubr.f32.mxu0 %v838
      %1525 = vmatmul.mubr.f32.gmra.mxu0 %v837
      %v1526 = vpop.f32.mrf.mxu0
      %v1527 = vadd.f32 %v1302, %v1526
      %v1528 = vpop.f32.mrf.mxu0
      %1529 = vmatprep.mubr.f32.mxu0 %v847
      %1530 = vmatmul.mubr.f32.gmra.mxu0 %v846
      %v1531 = vpop.f32.mrf.mxu0
      %v1532 = vadd.f32 %v1307, %v1531
      %v1533 = vpop.f32.mrf.mxu0
      %1534 = vmatprep.mubr.f32.mxu0 %v856
      %1535 = vmatmul.mubr.f32.gmra.mxu0 %v855
      %v1536 = vpop.f32.mrf.mxu0
      %v1537 = vadd.f32 %v1312, %v1536
      %v1538 = vpop.f32.mrf.mxu0
      %1539 = vmatprep.mubr.f32.mxu0 %v865
      %1540 = vmatmul.mubr.f32.gmra.mxu0 %v864
      %v1541 = vpop.f32.mrf.mxu0
      %v1542 = vadd.f32 %v1317, %v1541
      %v1543 = vpop.f32.mrf.mxu0
      %1544 = vmatprep.mubr.f32.mxu0 %v874
      %1545 = vmatmul.mubr.f32.gmra.mxu0 %v873
      %v1546 = vpop.f32.mrf.mxu0
      %v1547 = vadd.f32 %v1322, %v1546
      %v1548 = vpop.f32.mrf.mxu0
      %1549 = vmatprep.mubr.f32.mxu0 %v883
      %1550 = vmatmul.mubr.f32.gmra.mxu0 %v882
      %v1551 = vpop.f32.mrf.mxu0
      %v1552 = vadd.f32 %v1327, %v1551
      %v1553 = vpop.f32.mrf.mxu0
      %1554 = vmatprep.mubr.f32.mxu0 %v892
      %1555 = vmatmul.mubr.f32.gmra.mxu0 %v891
      %v1556 = vpop.f32.mrf.mxu0
      %v1557 = vadd.f32 %v1332, %v1556
      %v1558 = vpop.f32.mrf.mxu0
      %1559 = vmatprep.mubr.f32.mxu0 %v901
      %1560 = vmatmul.mubr.f32.gmra.mxu0 %v900
      %v1561 = vpop.f32.mrf.mxu0
      %v1562 = vadd.f32 %v1337, %v1561
      %v1563 = vpop.f32.mrf.mxu0
      %1564 = vmatprep.mubr.f32.mxu0 %v910
      %1565 = vmatmul.mubr.f32.gmra.mxu0 %v909
      %v1566 = vpop.f32.mrf.mxu0
      %v1567 = vadd.f32 %v1342, %v1566
      %v1568 = vpop.f32.mrf.mxu0
      %1569 = vmatprep.mubr.f32.mxu0 %v919
      %1570 = vmatmul.mubr.f32.gmra.mxu0 %v918
      %v1571 = vpop.f32.mrf.mxu0
      %v1572 = vadd.f32 %v1347, %v1571
      %v1573 = vpop.f32.mrf.mxu0
      %1574 = vmatprep.mubr.f32.mxu0 %v928
      %1575 = vmatmul.mubr.f32.gmra.mxu0 %v927
      %v1576 = vpop.f32.mrf.mxu0
      %v1577 = vadd.f32 %v1352, %v1576
      %v1578 = vpop.f32.mrf.mxu0
      %1579 = vmatprep.mubr.f32.mxu0 %v937
      %1580 = vmatmul.mubr.f32.gmra.mxu0 %v936
      %v1581 = vpop.f32.mrf.mxu0
      %v1582 = vadd.f32 %v1357, %v1581
      %v1583 = vpop.f32.mrf.mxu0
      %1584 = vmatprep.mubr.f32.mxu0 %v946
      %1585 = vmatmul.mubr.f32.gmra.mxu0 %v945
      %v1586 = vpop.f32.mrf.mxu0
      %v1587 = vadd.f32 %v1362, %v1586
      %v1588 = vpop.f32.mrf.mxu0
      %1589 = vmatprep.mubr.f32.mxu0 %v955
      %1590 = vmatmul.mubr.f32.gmra.mxu0 %v954
      %v1591 = vpop.f32.mrf.mxu0
      %v1592 = vadd.f32 %v1367, %v1591
      %v1593 = vpop.f32.mrf.mxu0
      %1594 = vmatprep.mubr.f32.mxu0 %v964
      %1595 = vmatmul.mubr.f32.gmra.mxu0 %v963
      %v1596 = vpop.f32.mrf.mxu0
      %v1597 = vadd.f32 %v1372, %v1596
      %v1598 = vpop.f32.mrf.mxu0
      %1599 = vmatprep.mubr.f32.mxu0 %v973
      %1600 = vmatmul.mubr.f32.gmra.mxu0 %v972
      %v1601 = vpop.f32.mrf.mxu0
      %v1602 = vadd.f32 %v1377, %v1601
      %v1603 = vpop.f32.mrf.mxu0
      %1604 = vmatprep.mubr.f32.mxu0 %v982
      %1605 = vmatmul.mubr.f32.gmra.mxu0 %v981
      %v1606 = vpop.f32.mrf.mxu0
      %v1607 = vadd.f32 %v1382, %v1606
      %v1608 = vpop.f32.mrf.mxu0
      %1609 = vmatprep.mubr.f32.mxu0 %v991
      %1610 = vmatmul.mubr.f32.gmra.mxu0 %v990
      %v1611 = vpop.f32.mrf.mxu0
      %v1612 = vadd.f32 %v1387, %v1611
      %v1613 = vpop.f32.mrf.mxu0
      %1614 = vmatprep.mubr.f32.mxu0 %v1000
      %1615 = vmatmul.mubr.f32.gmra.mxu0 %v999
      %v1616 = vpop.f32.mrf.mxu0
      %v1617 = vadd.f32 %v1392, %v1616
      %v1618 = vpop.f32.mrf.mxu0
      %1619 = vmatprep.mubr.f32.mxu0 %v1009
      %1620 = vmatmul.mubr.f32.gmra.mxu0 %v1008
      %v1621 = vpop.f32.mrf.mxu0
      %v1622 = vadd.f32 %v1397, %v1621
      %v1623 = vpop.f32.mrf.mxu0
      %1624 = vmatprep.mubr.f32.mxu0 %v1018
      %1625 = vmatmul.mubr.f32.gmra.mxu0 %v1017
      %v1626 = vpop.f32.mrf.mxu0
      %v1627 = vadd.f32 %v1402, %v1626
      %v1628 = vpop.f32.mrf.mxu0
      %1629 = vmatprep.mubr.f32.mxu0 %v1027
      %1630 = vmatmul.mubr.f32.gmra.mxu0 %v1026
      %v1631 = vpop.f32.mrf.mxu0
      %v1632 = vadd.f32 %v1407, %v1631
      %v1633 = vpop.f32.mrf.mxu0
      %1634 = vmatprep.mubr.f32.mxu0 %v1036
      %1635 = vmatmul.mubr.f32.gmra.mxu0 %v1035
      %v1636 = vpop.f32.mrf.mxu0
      %v1637 = vadd.f32 %v1412, %v1636
      %v1638 = vpop.f32.mrf.mxu0
      %1639 = vmatprep.mubr.f32.mxu0 %v1045
      %1640 = vmatmul.mubr.f32.gmra.mxu0 %v1044
      %v1641 = vpop.f32.mrf.mxu0
      %v1642 = vadd.f32 %v1417, %v1641
      %v1643 = vpop.f32.mrf.mxu0
      %1644 = vdwg.mxu0
      %1645 = vmatprep.subr.mxu0 0.0
      %1646 = vmatpush1.msra.mxu0 %v1130
      %1647 = vmatprep.subr.mxu0 0.0
      %1648 = vmatpush1.msra.mxu0 %v1129
      %1649 = vmatprep.subr.mxu0 0.0
      %1650 = vmatpush1.msra.mxu0 %v1128
      %1651 = vmatprep.subr.mxu0 0.0
      %1652 = vmatpush1.msra.mxu0 %v1127
      %1653 = vmatprep.subr.mxu0 0.0
      %1654 = vmatpush1.msra.mxu0 %v1126
      %1655 = vmatprep.subr.mxu0 0.0
      %1656 = vmatpush1.msra.mxu0 %v1125
      %1657 = vmatprep.subr.mxu0 0.0
      %1658 = vmatpush1.msra.mxu0 %v1124
      %1659 = vmatprep.subr.mxu0 0.0
      %1660 = vmatpush1.msra.mxu0 %v1123
      %1661 = vmatprep.subr.mxu0 0.0
      %1662 = vmatpush1.msra.mxu0 %v1122
      %1663 = vmatprep.subr.mxu0 0.0
      %1664 = vmatpush1.msra.mxu0 %v1121
      %1665 = vmatprep.subr.mxu0 0.0
      %1666 = vmatpush1.msra.mxu0 %v1120
      %1667 = vmatprep.subr.mxu0 0.0
      %1668 = vmatpush1.msra.mxu0 %v1119
      %1669 = vmatprep.subr.mxu0 0.0
      %1670 = vmatpush1.msra.mxu0 %v1118
      %1671 = vmatprep.subr.mxu0 0.0
      %1672 = vmatpush1.msra.mxu0 %v1117
      %1673 = vmatprep.subr.mxu0 0.0
      %1674 = vmatpush1.msra.mxu0 %v1116
      %1675 = vmatprep.subr.mxu0 0.0
      %1676 = vmatpush1.msra.mxu0 %v1115
      %1677 = vmatprep.subr.mxu0 0.0
      %1678 = vmatpush2.msra.mxu0 %v1146
      %1679 = vmatprep.subr.mxu0 0.0
      %1680 = vmatpush2.msra.mxu0 %v1145
      %1681 = vmatprep.subr.mxu0 0.0
      %1682 = vmatpush2.msra.mxu0 %v1144
      %1683 = vmatprep.subr.mxu0 0.0
      %1684 = vmatpush2.msra.mxu0 %v1143
      %1685 = vmatprep.subr.mxu0 0.0
      %1686 = vmatpush2.msra.mxu0 %v1142
      %1687 = vmatprep.subr.mxu0 0.0
      %1688 = vmatpush2.msra.mxu0 %v1141
      %1689 = vmatprep.subr.mxu0 0.0
      %1690 = vmatpush2.msra.mxu0 %v1140
      %1691 = vmatprep.subr.mxu0 0.0
      %1692 = vmatpush2.msra.mxu0 %v1139
      %1693 = vmatprep.subr.mxu0 0.0
      %1694 = vmatpush2.msra.mxu0 %v1138
      %1695 = vmatprep.subr.mxu0 0.0
      %1696 = vmatpush2.msra.mxu0 %v1137
      %1697 = vmatprep.subr.mxu0 0.0
      %1698 = vmatpush2.msra.mxu0 %v1136
      %1699 = vmatprep.subr.mxu0 0.0
      %1700 = vmatpush2.msra.mxu0 %v1135
      %1701 = vmatprep.subr.mxu0 0.0
      %1702 = vmatpush2.msra.mxu0 %v1134
      %1703 = vmatprep.subr.mxu0 0.0
      %1704 = vmatpush2.msra.mxu0 %v1133
      %1705 = vmatprep.subr.mxu0 0.0
      %1706 = vmatpush2.msra.mxu0 %v1132
      %1707 = vmatprep.subr.mxu0 0.0
      %1708 = vmatpush2.msra.mxu0 %v1131
      %1709 = vmatprep.mubr.f32.mxu0 %v768
      %1710 = vmatmul.mubr.f32.gmra.mxu0 %v767
      %v1711 = vpop.f32.mrf.mxu0
      %v1712 = vadd.f32 %v1487, %v1711
      %v1713 = vpop.f32.mrf.mxu0
      %1714 = vmatprep.mubr.f32.mxu0 %v777
      %1715 = vmatmul.mubr.f32.gmra.mxu0 %v776
      %v1716 = vpop.f32.mrf.mxu0
      %v1717 = vadd.f32 %v1492, %v1716
      %v1718 = vpop.f32.mrf.mxu0
      %1719 = vmatprep.mubr.f32.mxu0 %v786
      %1720 = vmatmul.mubr.f32.gmra.mxu0 %v785
      %v1721 = vpop.f32.mrf.mxu0
      %v1722 = vadd.f32 %v1497, %v1721
      %v1723 = vpop.f32.mrf.mxu0
      %1724 = vmatprep.mubr.f32.mxu0 %v795
      %1725 = vmatmul.mubr.f32.gmra.mxu0 %v794
      %v1726 = vpop.f32.mrf.mxu0
      %v1727 = vadd.f32 %v1502, %v1726
      %v1728 = vpop.f32.mrf.mxu0
      %1729 = vmatprep.mubr.f32.mxu0 %v804
      %1730 = vmatmul.mubr.f32.gmra.mxu0 %v803
      %v1731 = vpop.f32.mrf.mxu0
      %v1732 = vadd.f32 %v1507, %v1731
      %v1733 = vpop.f32.mrf.mxu0
      %1734 = vmatprep.mubr.f32.mxu0 %v813
      %1735 = vmatmul.mubr.f32.gmra.mxu0 %v812
      %v1736 = vpop.f32.mrf.mxu0
      %v1737 = vadd.f32 %v1512, %v1736
      %v1738 = vpop.f32.mrf.mxu0
      %1739 = vmatprep.mubr.f32.mxu0 %v822
      %1740 = vmatmul.mubr.f32.gmra.mxu0 %v821
      %v1741 = vpop.f32.mrf.mxu0
      %v1742 = vadd.f32 %v1517, %v1741
      %v1743 = vpop.f32.mrf.mxu0
      %1744 = vmatprep.mubr.f32.mxu0 %v831
      %1745 = vmatmul.mubr.f32.gmra.mxu0 %v830
      %v1746 = vpop.f32.mrf.mxu0
      %v1747 = vadd.f32 %v1522, %v1746
      %v1748 = vpop.f32.mrf.mxu0
      %1749 = vmatprep.mubr.f32.mxu0 %v840
      %1750 = vmatmul.mubr.f32.gmra.mxu0 %v839
      %v1751 = vpop.f32.mrf.mxu0
      %v1752 = vadd.f32 %v1527, %v1751
      %v1753 = vpop.f32.mrf.mxu0
      %1754 = vmatprep.mubr.f32.mxu0 %v849
      %1755 = vmatmul.mubr.f32.gmra.mxu0 %v848
      %v1756 = vpop.f32.mrf.mxu0
      %v1757 = vadd.f32 %v1532, %v1756
      %v1758 = vpop.f32.mrf.mxu0
      %1759 = vmatprep.mubr.f32.mxu0 %v858
      %1760 = vmatmul.mubr.f32.gmra.mxu0 %v857
      %v1761 = vpop.f32.mrf.mxu0
      %v1762 = vadd.f32 %v1537, %v1761
      %v1763 = vpop.f32.mrf.mxu0
      %1764 = vmatprep.mubr.f32.mxu0 %v867
      %1765 = vmatmul.mubr.f32.gmra.mxu0 %v866
      %v1766 = vpop.f32.mrf.mxu0
      %v1767 = vadd.f32 %v1542, %v1766
      %v1768 = vpop.f32.mrf.mxu0
      %1769 = vmatprep.mubr.f32.mxu0 %v876
      %1770 = vmatmul.mubr.f32.gmra.mxu0 %v875
      %v1771 = vpop.f32.mrf.mxu0
      %v1772 = vadd.f32 %v1547, %v1771
      %v1773 = vpop.f32.mrf.mxu0
      %1774 = vmatprep.mubr.f32.mxu0 %v885
      %1775 = vmatmul.mubr.f32.gmra.mxu0 %v884
      %v1776 = vpop.f32.mrf.mxu0
      %v1777 = vadd.f32 %v1552, %v1776
      %v1778 = vpop.f32.mrf.mxu0
      %1779 = vmatprep.mubr.f32.mxu0 %v894
      %1780 = vmatmul.mubr.f32.gmra.mxu0 %v893
      %v1781 = vpop.f32.mrf.mxu0
      %v1782 = vadd.f32 %v1557, %v1781
      %v1783 = vpop.f32.mrf.mxu0
      %1784 = vmatprep.mubr.f32.mxu0 %v903
      %1785 = vmatmul.mubr.f32.gmra.mxu0 %v902
      %v1786 = vpop.f32.mrf.mxu0
      %v1787 = vadd.f32 %v1562, %v1786
      %v1788 = vpop.f32.mrf.mxu0
      %1789 = vmatprep.mubr.f32.mxu0 %v912
      %1790 = vmatmul.mubr.f32.gmra.mxu0 %v911
      %v1791 = vpop.f32.mrf.mxu0
      %v1792 = vadd.f32 %v1567, %v1791
      %v1793 = vpop.f32.mrf.mxu0
      %1794 = vmatprep.mubr.f32.mxu0 %v921
      %1795 = vmatmul.mubr.f32.gmra.mxu0 %v920
      %v1796 = vpop.f32.mrf.mxu0
      %v1797 = vadd.f32 %v1572, %v1796
      %v1798 = vpop.f32.mrf.mxu0
      %1799 = vmatprep.mubr.f32.mxu0 %v930
      %1800 = vmatmul.mubr.f32.gmra.mxu0 %v929
      %v1801 = vpop.f32.mrf.mxu0
      %v1802 = vadd.f32 %v1577, %v1801
      %v1803 = vpop.f32.mrf.mxu0
      %1804 = vmatprep.mubr.f32.mxu0 %v939
      %1805 = vmatmul.mubr.f32.gmra.mxu0 %v938
      %v1806 = vpop.f32.mrf.mxu0
      %v1807 = vadd.f32 %v1582, %v1806
      %v1808 = vpop.f32.mrf.mxu0
      %1809 = vmatprep.mubr.f32.mxu0 %v948
      %1810 = vmatmul.mubr.f32.gmra.mxu0 %v947
      %v1811 = vpop.f32.mrf.mxu0
      %v1812 = vadd.f32 %v1587, %v1811
      %v1813 = vpop.f32.mrf.mxu0
      %1814 = vmatprep.mubr.f32.mxu0 %v957
      %1815 = vmatmul.mubr.f32.gmra.mxu0 %v956
      %v1816 = vpop.f32.mrf.mxu0
      %v1817 = vadd.f32 %v1592, %v1816
      %v1818 = vpop.f32.mrf.mxu0
      %1819 = vmatprep.mubr.f32.mxu0 %v966
      %1820 = vmatmul.mubr.f32.gmra.mxu0 %v965
      %v1821 = vpop.f32.mrf.mxu0
      %v1822 = vadd.f32 %v1597, %v1821
      %v1823 = vpop.f32.mrf.mxu0
      %1824 = vmatprep.mubr.f32.mxu0 %v975
      %1825 = vmatmul.mubr.f32.gmra.mxu0 %v974
      %v1826 = vpop.f32.mrf.mxu0
      %v1827 = vadd.f32 %v1602, %v1826
      %v1828 = vpop.f32.mrf.mxu0
      %1829 = vmatprep.mubr.f32.mxu0 %v984
      %1830 = vmatmul.mubr.f32.gmra.mxu0 %v983
      %v1831 = vpop.f32.mrf.mxu0
      %v1832 = vadd.f32 %v1607, %v1831
      %v1833 = vpop.f32.mrf.mxu0
      %1834 = vmatprep.mubr.f32.mxu0 %v993
      %1835 = vmatmul.mubr.f32.gmra.mxu0 %v992
      %v1836 = vpop.f32.mrf.mxu0
      %v1837 = vadd.f32 %v1612, %v1836
      %v1838 = vpop.f32.mrf.mxu0
      %1839 = vmatprep.mubr.f32.mxu0 %v1002
      %1840 = vmatmul.mubr.f32.gmra.mxu0 %v1001
      %v1841 = vpop.f32.mrf.mxu0
      %v1842 = vadd.f32 %v1617, %v1841
      %v1843 = vpop.f32.mrf.mxu0
      %1844 = vmatprep.mubr.f32.mxu0 %v1011
      %1845 = vmatmul.mubr.f32.gmra.mxu0 %v1010
      %v1846 = vpop.f32.mrf.mxu0
      %v1847 = vadd.f32 %v1622, %v1846
      %v1848 = vpop.f32.mrf.mxu0
      %1849 = vmatprep.mubr.f32.mxu0 %v1020
      %1850 = vmatmul.mubr.f32.gmra.mxu0 %v1019
      %v1851 = vpop.f32.mrf.mxu0
      %v1852 = vadd.f32 %v1627, %v1851
      %v1853 = vpop.f32.mrf.mxu0
      %1854 = vmatprep.mubr.f32.mxu0 %v1029
      %1855 = vmatmul.mubr.f32.gmra.mxu0 %v1028
      %v1856 = vpop.f32.mrf.mxu0
      %v1857 = vadd.f32 %v1632, %v1856
      %v1858 = vpop.f32.mrf.mxu0
      %1859 = vmatprep.mubr.f32.mxu0 %v1038
      %1860 = vmatmul.mubr.f32.gmra.mxu0 %v1037
      %v1861 = vpop.f32.mrf.mxu0
      %v1862 = vadd.f32 %v1637, %v1861
      %v1863 = vpop.f32.mrf.mxu0
      %1864 = vmatprep.mubr.f32.mxu0 %v1047
      %1865 = vmatmul.mubr.f32.gmra.mxu0 %v1046
      %v1866 = vpop.f32.mrf.mxu0
      %v1867 = vadd.f32 %v1642, %v1866
      %v1868 = vpop.f32.mrf.mxu0
      %1869 = vdwg.mxu0
      %1870 = vmatprep.subr.mxu0 0.0
      %1871 = vmatpush1.msra.mxu0 %v1162
      %1872 = vmatprep.subr.mxu0 0.0
      %1873 = vmatpush1.msra.mxu0 %v1161
      %1874 = vmatprep.subr.mxu0 0.0
      %1875 = vmatpush1.msra.mxu0 %v1160
      %1876 = vmatprep.subr.mxu0 0.0
      %1877 = vmatpush1.msra.mxu0 %v1159
      %1878 = vmatprep.subr.mxu0 0.0
      %1879 = vmatpush1.msra.mxu0 %v1158
      %1880 = vmatprep.subr.mxu0 0.0
      %1881 = vmatpush1.msra.mxu0 %v1157
      %1882 = vmatprep.subr.mxu0 0.0
      %1883 = vmatpush1.msra.mxu0 %v1156
      %1884 = vmatprep.subr.mxu0 0.0
      %1885 = vmatpush1.msra.mxu0 %v1155
      %1886 = vmatprep.subr.mxu0 0.0
      %1887 = vmatpush1.msra.mxu0 %v1154
      %1888 = vmatprep.subr.mxu0 0.0
      %1889 = vmatpush1.msra.mxu0 %v1153
      %1890 = vmatprep.subr.mxu0 0.0
      %1891 = vmatpush1.msra.mxu0 %v1152
      %1892 = vmatprep.subr.mxu0 0.0
      %1893 = vmatpush1.msra.mxu0 %v1151
      %1894 = vmatprep.subr.mxu0 0.0
      %1895 = vmatpush1.msra.mxu0 %v1150
      %1896 = vmatprep.subr.mxu0 0.0
      %1897 = vmatpush1.msra.mxu0 %v1149
      %1898 = vmatprep.subr.mxu0 0.0
      %1899 = vmatpush1.msra.mxu0 %v1148
      %1900 = vmatprep.subr.mxu0 0.0
      %1901 = vmatpush1.msra.mxu0 %v1147
      %1902 = vmatprep.subr.mxu0 0.0
      %1903 = vmatpush2.msra.mxu0 %v1178
      %1904 = vmatprep.subr.mxu0 0.0
      %1905 = vmatpush2.msra.mxu0 %v1177
      %1906 = vmatprep.subr.mxu0 0.0
      %1907 = vmatpush2.msra.mxu0 %v1176
      %1908 = vmatprep.subr.mxu0 0.0
      %1909 = vmatpush2.msra.mxu0 %v1175
      %1910 = vmatprep.subr.mxu0 0.0
      %1911 = vmatpush2.msra.mxu0 %v1174
      %1912 = vmatprep.subr.mxu0 0.0
      %1913 = vmatpush2.msra.mxu0 %v1173
      %1914 = vmatprep.subr.mxu0 0.0
      %1915 = vmatpush2.msra.mxu0 %v1172
      %1916 = vmatprep.subr.mxu0 0.0
      %1917 = vmatpush2.msra.mxu0 %v1171
      %1918 = vmatprep.subr.mxu0 0.0
      %1919 = vmatpush2.msra.mxu0 %v1170
      %1920 = vmatprep.subr.mxu0 0.0
      %1921 = vmatpush2.msra.mxu0 %v1169
      %1922 = vmatprep.subr.mxu0 0.0
      %1923 = vmatpush2.msra.mxu0 %v1168
      %1924 = vmatprep.subr.mxu0 0.0
      %1925 = vmatpush2.msra.mxu0 %v1167
      %1926 = vmatprep.subr.mxu0 0.0
      %1927 = vmatpush2.msra.mxu0 %v1166
      %1928 = vmatprep.subr.mxu0 0.0
      %1929 = vmatpush2.msra.mxu0 %v1165
      %1930 = vmatprep.subr.mxu0 0.0
      %1931 = vmatpush2.msra.mxu0 %v1164
      %1932 = vmatprep.subr.mxu0 0.0
      %1933 = vmatpush2.msra.mxu0 %v1163
      %1934 = vmatprep.mubr.f32.mxu0 %v770
      %1935 = vmatmul.mubr.f32.gmra.mxu0 %v769
      %v1936 = vpop.f32.mrf.mxu0
      %v1937 = vadd.f32 %v1712, %v1936
      %v1938 = vpop.f32.mrf.mxu0
      %1939 = vmatprep.mubr.f32.mxu0 %v779
      %1940 = vmatmul.mubr.f32.gmra.mxu0 %v778
      %v1941 = vpop.f32.mrf.mxu0
      %v1942 = vadd.f32 %v1717, %v1941
      %v1943 = vpop.f32.mrf.mxu0
      %1944 = vmatprep.mubr.f32.mxu0 %v788
      %1945 = vmatmul.mubr.f32.gmra.mxu0 %v787
      %v1946 = vpop.f32.mrf.mxu0
      %v1947 = vadd.f32 %v1722, %v1946
      %v1948 = vpop.f32.mrf.mxu0
      %1949 = vmatprep.mubr.f32.mxu0 %v797
      %1950 = vmatmul.mubr.f32.gmra.mxu0 %v796
      %v1951 = vpop.f32.mrf.mxu0
      %v1952 = vadd.f32 %v1727, %v1951
      %v1953 = vpop.f32.mrf.mxu0
      %1954 = vmatprep.mubr.f32.mxu0 %v806
      %1955 = vmatmul.mubr.f32.gmra.mxu0 %v805
      %v1956 = vpop.f32.mrf.mxu0
      %v1957 = vadd.f32 %v1732, %v1956
      %v1958 = vpop.f32.mrf.mxu0
      %1959 = vmatprep.mubr.f32.mxu0 %v815
      %1960 = vmatmul.mubr.f32.gmra.mxu0 %v814
      %v1961 = vpop.f32.mrf.mxu0
      %v1962 = vadd.f32 %v1737, %v1961
      %v1963 = vpop.f32.mrf.mxu0
      %1964 = vmatprep.mubr.f32.mxu0 %v824
      %1965 = vmatmul.mubr.f32.gmra.mxu0 %v823
      %v1966 = vpop.f32.mrf.mxu0
      %v1967 = vadd.f32 %v1742, %v1966
      %v1968 = vpop.f32.mrf.mxu0
      %1969 = vmatprep.mubr.f32.mxu0 %v833
      %1970 = vmatmul.mubr.f32.gmra.mxu0 %v832
      %v1971 = vpop.f32.mrf.mxu0
      %v1972 = vadd.f32 %v1747, %v1971
      %v1973 = vpop.f32.mrf.mxu0
      %1974 = vmatprep.mubr.f32.mxu0 %v842
      %1975 = vmatmul.mubr.f32.gmra.mxu0 %v841
      %v1976 = vpop.f32.mrf.mxu0
      %v1977 = vadd.f32 %v1752, %v1976
      %v1978 = vpop.f32.mrf.mxu0
      %1979 = vmatprep.mubr.f32.mxu0 %v851
      %1980 = vmatmul.mubr.f32.gmra.mxu0 %v850
      %v1981 = vpop.f32.mrf.mxu0
      %v1982 = vadd.f32 %v1757, %v1981
      %v1983 = vpop.f32.mrf.mxu0
      %1984 = vmatprep.mubr.f32.mxu0 %v860
      %1985 = vmatmul.mubr.f32.gmra.mxu0 %v859
      %v1986 = vpop.f32.mrf.mxu0
      %v1987 = vadd.f32 %v1762, %v1986
      %v1988 = vpop.f32.mrf.mxu0
      %1989 = vmatprep.mubr.f32.mxu0 %v869
      %1990 = vmatmul.mubr.f32.gmra.mxu0 %v868
      %v1991 = vpop.f32.mrf.mxu0
      %v1992 = vadd.f32 %v1767, %v1991
      %v1993 = vpop.f32.mrf.mxu0
      %1994 = vmatprep.mubr.f32.mxu0 %v878
      %1995 = vmatmul.mubr.f32.gmra.mxu0 %v877
      %v1996 = vpop.f32.mrf.mxu0
      %v1997 = vadd.f32 %v1772, %v1996
      %v1998 = vpop.f32.mrf.mxu0
      %1999 = vmatprep.mubr.f32.mxu0 %v887
      %2000 = vmatmul.mubr.f32.gmra.mxu0 %v886
      %v2001 = vpop.f32.mrf.mxu0
      %v2002 = vadd.f32 %v1777, %v2001
      %v2003 = vpop.f32.mrf.mxu0
      %2004 = vmatprep.mubr.f32.mxu0 %v896
      %2005 = vmatmul.mubr.f32.gmra.mxu0 %v895
      %v2006 = vpop.f32.mrf.mxu0
      %v2007 = vadd.f32 %v1782, %v2006
      %v2008 = vpop.f32.mrf.mxu0
      %2009 = vmatprep.mubr.f32.mxu0 %v905
      %2010 = vmatmul.mubr.f32.gmra.mxu0 %v904
      %v2011 = vpop.f32.mrf.mxu0
      %v2012 = vadd.f32 %v1787, %v2011
      %v2013 = vpop.f32.mrf.mxu0
      %2014 = vmatprep.mubr.f32.mxu0 %v914
      %2015 = vmatmul.mubr.f32.gmra.mxu0 %v913
      %v2016 = vpop.f32.mrf.mxu0
      %v2017 = vadd.f32 %v1792, %v2016
      %v2018 = vpop.f32.mrf.mxu0
      %2019 = vmatprep.mubr.f32.mxu0 %v923
      %2020 = vmatmul.mubr.f32.gmra.mxu0 %v922
      %v2021 = vpop.f32.mrf.mxu0
      %v2022 = vadd.f32 %v1797, %v2021
      %v2023 = vpop.f32.mrf.mxu0
      %2024 = vmatprep.mubr.f32.mxu0 %v932
      %2025 = vmatmul.mubr.f32.gmra.mxu0 %v931
      %v2026 = vpop.f32.mrf.mxu0
      %v2027 = vadd.f32 %v1802, %v2026
      %v2028 = vpop.f32.mrf.mxu0
      %2029 = vmatprep.mubr.f32.mxu0 %v941
      %2030 = vmatmul.mubr.f32.gmra.mxu0 %v940
      %v2031 = vpop.f32.mrf.mxu0
      %v2032 = vadd.f32 %v1807, %v2031
      %v2033 = vpop.f32.mrf.mxu0
      %2034 = vmatprep.mubr.f32.mxu0 %v950
      %2035 = vmatmul.mubr.f32.gmra.mxu0 %v949
      %v2036 = vpop.f32.mrf.mxu0
      %v2037 = vadd.f32 %v1812, %v2036
      %v2038 = vpop.f32.mrf.mxu0
      %2039 = vmatprep.mubr.f32.mxu0 %v959
      %2040 = vmatmul.mubr.f32.gmra.mxu0 %v958
      %v2041 = vpop.f32.mrf.mxu0
      %v2042 = vadd.f32 %v1817, %v2041
      %v2043 = vpop.f32.mrf.mxu0
      %2044 = vmatprep.mubr.f32.mxu0 %v968
      %2045 = vmatmul.mubr.f32.gmra.mxu0 %v967
      %v2046 = vpop.f32.mrf.mxu0
      %v2047 = vadd.f32 %v1822, %v2046
      %v2048 = vpop.f32.mrf.mxu0
      %2049 = vmatprep.mubr.f32.mxu0 %v977
      %2050 = vmatmul.mubr.f32.gmra.mxu0 %v976
      %v2051 = vpop.f32.mrf.mxu0
      %v2052 = vadd.f32 %v1827, %v2051
      %v2053 = vpop.f32.mrf.mxu0
      %2054 = vmatprep.mubr.f32.mxu0 %v986
      %2055 = vmatmul.mubr.f32.gmra.mxu0 %v985
      %v2056 = vpop.f32.mrf.mxu0
      %v2057 = vadd.f32 %v1832, %v2056
      %v2058 = vpop.f32.mrf.mxu0
      %2059 = vmatprep.mubr.f32.mxu0 %v995
      %2060 = vmatmul.mubr.f32.gmra.mxu0 %v994
      %v2061 = vpop.f32.mrf.mxu0
      %v2062 = vadd.f32 %v1837, %v2061
      %v2063 = vpop.f32.mrf.mxu0
      %2064 = vmatprep.mubr.f32.mxu0 %v1004
      %2065 = vmatmul.mubr.f32.gmra.mxu0 %v1003
      %v2066 = vpop.f32.mrf.mxu0
      %v2067 = vadd.f32 %v1842, %v2066
      %v2068 = vpop.f32.mrf.mxu0
      %2069 = vmatprep.mubr.f32.mxu0 %v1013
      %2070 = vmatmul.mubr.f32.gmra.mxu0 %v1012
      %v2071 = vpop.f32.mrf.mxu0
      %v2072 = vadd.f32 %v1847, %v2071
      %v2073 = vpop.f32.mrf.mxu0
      %2074 = vmatprep.mubr.f32.mxu0 %v1022
      %2075 = vmatmul.mubr.f32.gmra.mxu0 %v1021
      %v2076 = vpop.f32.mrf.mxu0
      %v2077 = vadd.f32 %v1852, %v2076
      %v2078 = vpop.f32.mrf.mxu0
      %2079 = vmatprep.mubr.f32.mxu0 %v1031
      %2080 = vmatmul.mubr.f32.gmra.mxu0 %v1030
      %v2081 = vpop.f32.mrf.mxu0
      %v2082 = vadd.f32 %v1857, %v2081
      %v2083 = vpop.f32.mrf.mxu0
      %2084 = vmatprep.mubr.f32.mxu0 %v1040
      %2085 = vmatmul.mubr.f32.gmra.mxu0 %v1039
      %v2086 = vpop.f32.mrf.mxu0
      %v2087 = vadd.f32 %v1862, %v2086
      %v2088 = vpop.f32.mrf.mxu0
      %2089 = vmatprep.mubr.f32.mxu0 %v1049
      %2090 = vmatmul.mubr.f32.gmra.mxu0 %v1048
      %v2091 = vpop.f32.mrf.mxu0
      %v2092 = vadd.f32 %v1867, %v2091
      %v2093 = vpop.f32.mrf.mxu0
      %2094 = vdwg.mxu0
      %2095 = vmatprep.subr.mxu0 0.0
      %2096 = vmatpush1.msra.mxu0 %v1194
      %2097 = vmatprep.subr.mxu0 0.0
      %2098 = vmatpush1.msra.mxu0 %v1193
      %2099 = vmatprep.subr.mxu0 0.0
      %2100 = vmatpush1.msra.mxu0 %v1192
      %2101 = vmatprep.subr.mxu0 0.0
      %2102 = vmatpush1.msra.mxu0 %v1191
      %2103 = vmatprep.subr.mxu0 0.0
      %2104 = vmatpush1.msra.mxu0 %v1190
      %2105 = vmatprep.subr.mxu0 0.0
      %2106 = vmatpush1.msra.mxu0 %v1189
      %2107 = vmatprep.subr.mxu0 0.0
      %2108 = vmatpush1.msra.mxu0 %v1188
      %2109 = vmatprep.subr.mxu0 0.0
      %2110 = vmatpush1.msra.mxu0 %v1187
      %2111 = vmatprep.subr.mxu0 0.0
      %2112 = vmatpush1.msra.mxu0 %v1186
      %2113 = vmatprep.subr.mxu0 0.0
      %2114 = vmatpush1.msra.mxu0 %v1185
      %2115 = vmatprep.subr.mxu0 0.0
      %2116 = vmatpush1.msra.mxu0 %v1184
      %2117 = vmatprep.subr.mxu0 0.0
      %2118 = vmatpush1.msra.mxu0 %v1183
      %2119 = vmatprep.subr.mxu0 0.0
      %2120 = vmatpush1.msra.mxu0 %v1182
      %2121 = vmatprep.subr.mxu0 0.0
      %2122 = vmatpush1.msra.mxu0 %v1181
      %2123 = vmatprep.subr.mxu0 0.0
      %2124 = vmatpush1.msra.mxu0 %v1180
      %2125 = vmatprep.subr.mxu0 0.0
      %2126 = vmatpush1.msra.mxu0 %v1179
      %2127 = vmatprep.subr.mxu0 0.0
      %2128 = vmatpush2.msra.mxu0 0.0
      %2129 = vmatprep.subr.mxu0 0.0
      %2130 = vmatpush2.msra.mxu0 0.0
      %2131 = vmatprep.subr.mxu0 0.0
      %2132 = vmatpush2.msra.mxu0 0.0
      %2133 = vmatprep.subr.mxu0 0.0
      %2134 = vmatpush2.msra.mxu0 0.0
      %2135 = vmatprep.subr.mxu0 0.0
      %2136 = vmatpush2.msra.mxu0 0.0
      %2137 = vmatprep.subr.mxu0 0.0
      %2138 = vmatpush2.msra.mxu0 0.0
      %2139 = vmatprep.subr.mxu0 0.0
      %2140 = vmatpush2.msra.mxu0 0.0
      %2141 = vmatprep.subr.mxu0 0.0
      %2142 = vmatpush2.msra.mxu0 0.0
      %2143 = vmatprep.subr.mxu0 0.0
      %2144 = vmatpush2.msra.mxu0 0.0
      %2145 = vmatprep.subr.mxu0 0.0
      %2146 = vmatpush2.msra.mxu0 0.0
      %2147 = vmatprep.subr.mxu0 0.0
      %2148 = vmatpush2.msra.mxu0 0.0
      %2149 = vmatprep.subr.mxu0 0.0
      %2150 = vmatpush2.msra.mxu0 0.0
      %2151 = vmatprep.subr.mxu0 0.0
      %2152 = vmatpush2.msra.mxu0 0.0
      %2153 = vmatprep.subr.mxu0 0.0
      %2154 = vmatpush2.msra.mxu0 0.0
      %2155 = vmatprep.subr.mxu0 0.0
      %2156 = vmatpush2.msra.mxu0 0.0
      %2157 = vmatprep.subr.mxu0 0.0
      %2158 = vmatpush2.msra.mxu0 0.0
      %2159 = vmatprep.mubr.f32.mxu0 0.0
      %2160 = vmatmul.mubr.f32.gmra.mxu0 %v771
      %v2161 = vpop.f32.mrf.mxu0
      %v2162 = vadd.f32 %v1937, %v2161
      %v2163 = vpop.f32.mrf.mxu0
      %2164 = vmatprep.mubr.f32.mxu0 0.0
      %2165 = vmatmul.mubr.f32.gmra.mxu0 %v780
      %v2166 = vpop.f32.mrf.mxu0
      %v2167 = vadd.f32 %v1942, %v2166
      %v2168 = vpop.f32.mrf.mxu0
      %2169 = vmatprep.mubr.f32.mxu0 0.0
      %2170 = vmatmul.mubr.f32.gmra.mxu0 %v789
      %v2171 = vpop.f32.mrf.mxu0
      %v2172 = vadd.f32 %v1947, %v2171
      %v2173 = vpop.f32.mrf.mxu0
      %2174 = vmatprep.mubr.f32.mxu0 0.0
      %2175 = vmatmul.mubr.f32.gmra.mxu0 %v798
      %v2176 = vpop.f32.mrf.mxu0
      %v2177 = vadd.f32 %v1952, %v2176
      %v2178 = vpop.f32.mrf.mxu0
      %2179 = vmatprep.mubr.f32.mxu0 0.0
      %2180 = vmatmul.mubr.f32.gmra.mxu0 %v807
      %v2181 = vpop.f32.mrf.mxu0
      %v2182 = vadd.f32 %v1957, %v2181
      %v2183 = vpop.f32.mrf.mxu0
      %2184 = vmatprep.mubr.f32.mxu0 0.0
      %2185 = vmatmul.mubr.f32.gmra.mxu0 %v816
      %v2186 = vpop.f32.mrf.mxu0
      %v2187 = vadd.f32 %v1962, %v2186
      %v2188 = vpop.f32.mrf.mxu0
      %2189 = vmatprep.mubr.f32.mxu0 0.0
      %2190 = vmatmul.mubr.f32.gmra.mxu0 %v825
      %v2191 = vpop.f32.mrf.mxu0
      %v2192 = vadd.f32 %v1967, %v2191
      %v2193 = vpop.f32.mrf.mxu0
      %2194 = vmatprep.mubr.f32.mxu0 0.0
      %2195 = vmatmul.mubr.f32.gmra.mxu0 %v834
      %v2196 = vpop.f32.mrf.mxu0
      %v2197 = vadd.f32 %v1972, %v2196
      %v2198 = vpop.f32.mrf.mxu0
      %2199 = vmatprep.mubr.f32.mxu0 0.0
      %2200 = vmatmul.mubr.f32.gmra.mxu0 %v843
      %v2201 = vpop.f32.mrf.mxu0
      %v2202 = vadd.f32 %v1977, %v2201
      %v2203 = vpop.f32.mrf.mxu0
      %2204 = vmatprep.mubr.f32.mxu0 0.0
      %2205 = vmatmul.mubr.f32.gmra.mxu0 %v852
      %v2206 = vpop.f32.mrf.mxu0
      %v2207 = vadd.f32 %v1982, %v2206
      %v2208 = vpop.f32.mrf.mxu0
      %2209 = vmatprep.mubr.f32.mxu0 0.0
      %2210 = vmatmul.mubr.f32.gmra.mxu0 %v861
      %v2211 = vpop.f32.mrf.mxu0
      %v2212 = vadd.f32 %v1987, %v2211
      %v2213 = vpop.f32.mrf.mxu0
      %2214 = vmatprep.mubr.f32.mxu0 0.0
      %2215 = vmatmul.mubr.f32.gmra.mxu0 %v870
      %v2216 = vpop.f32.mrf.mxu0
      %v2217 = vadd.f32 %v1992, %v2216
      %v2218 = vpop.f32.mrf.mxu0
      %2219 = vmatprep.mubr.f32.mxu0 0.0
      %2220 = vmatmul.mubr.f32.gmra.mxu0 %v879
      %v2221 = vpop.f32.mrf.mxu0
      %v2222 = vadd.f32 %v1997, %v2221
      %v2223 = vpop.f32.mrf.mxu0
      %2224 = vmatprep.mubr.f32.mxu0 0.0
      %2225 = vmatmul.mubr.f32.gmra.mxu0 %v888
      %v2226 = vpop.f32.mrf.mxu0
      %v2227 = vadd.f32 %v2002, %v2226
      %v2228 = vpop.f32.mrf.mxu0
      %2229 = vmatprep.mubr.f32.mxu0 0.0
      %2230 = vmatmul.mubr.f32.gmra.mxu0 %v897
      %v2231 = vpop.f32.mrf.mxu0
      %v2232 = vadd.f32 %v2007, %v2231
      %v2233 = vpop.f32.mrf.mxu0
      %2234 = vmatprep.mubr.f32.mxu0 0.0
      %2235 = vmatmul.mubr.f32.gmra.mxu0 %v906
      %v2236 = vpop.f32.mrf.mxu0
      %v2237 = vadd.f32 %v2012, %v2236
      %v2238 = vpop.f32.mrf.mxu0
      %2239 = vmatprep.mubr.f32.mxu0 0.0
      %2240 = vmatmul.mubr.f32.gmra.mxu0 %v915
      %v2241 = vpop.f32.mrf.mxu0
      %v2242 = vadd.f32 %v2017, %v2241
      %v2243 = vpop.f32.mrf.mxu0
      %2244 = vmatprep.mubr.f32.mxu0 0.0
      %2245 = vmatmul.mubr.f32.gmra.mxu0 %v924
      %v2246 = vpop.f32.mrf.mxu0
      %v2247 = vadd.f32 %v2022, %v2246
      %v2248 = vpop.f32.mrf.mxu0
      %2249 = vmatprep.mubr.f32.mxu0 0.0
      %2250 = vmatmul.mubr.f32.gmra.mxu0 %v933
      %v2251 = vpop.f32.mrf.mxu0
      %v2252 = vadd.f32 %v2027, %v2251
      %v2253 = vpop.f32.mrf.mxu0
      %2254 = vmatprep.mubr.f32.mxu0 0.0
      %2255 = vmatmul.mubr.f32.gmra.mxu0 %v942
      %v2256 = vpop.f32.mrf.mxu0
      %v2257 = vadd.f32 %v2032, %v2256
      %v2258 = vpop.f32.mrf.mxu0
      %2259 = vmatprep.mubr.f32.mxu0 0.0
      %2260 = vmatmul.mubr.f32.gmra.mxu0 %v951
      %v2261 = vpop.f32.mrf.mxu0
      %v2262 = vadd.f32 %v2037, %v2261
      %v2263 = vpop.f32.mrf.mxu0
      %2264 = vmatprep.mubr.f32.mxu0 0.0
      %2265 = vmatmul.mubr.f32.gmra.mxu0 %v960
      %v2266 = vpop.f32.mrf.mxu0
      %v2267 = vadd.f32 %v2042, %v2266
      %v2268 = vpop.f32.mrf.mxu0
      %2269 = vmatprep.mubr.f32.mxu0 0.0
      %2270 = vmatmul.mubr.f32.gmra.mxu0 %v969
      %v2271 = vpop.f32.mrf.mxu0
      %v2272 = vadd.f32 %v2047, %v2271
      %v2273 = vpop.f32.mrf.mxu0
      %2274 = vmatprep.mubr.f32.mxu0 0.0
      %2275 = vmatmul.mubr.f32.gmra.mxu0 %v978
      %v2276 = vpop.f32.mrf.mxu0
      %v2277 = vadd.f32 %v2052, %v2276
      %v2278 = vpop.f32.mrf.mxu0
      %2279 = vmatprep.mubr.f32.mxu0 0.0
      %2280 = vmatmul.mubr.f32.gmra.mxu0 %v987
      %v2281 = vpop.f32.mrf.mxu0
      %v2282 = vadd.f32 %v2057, %v2281
      %v2283 = vpop.f32.mrf.mxu0
      %2284 = vmatprep.mubr.f32.mxu0 0.0
      %2285 = vmatmul.mubr.f32.gmra.mxu0 %v996
      %v2286 = vpop.f32.mrf.mxu0
      %v2287 = vadd.f32 %v2062, %v2286
      %v2288 = vpop.f32.mrf.mxu0
      %2289 = vmatprep.mubr.f32.mxu0 0.0
      %2290 = vmatmul.mubr.f32.gmra.mxu0 %v1005
      %v2291 = vpop.f32.mrf.mxu0
      %v2292 = vadd.f32 %v2067, %v2291
      %v2293 = vpop.f32.mrf.mxu0
      %2294 = vmatprep.mubr.f32.mxu0 0.0
      %2295 = vmatmul.mubr.f32.gmra.mxu0 %v1014
      %v2296 = vpop.f32.mrf.mxu0
      %v2297 = vadd.f32 %v2072, %v2296
      %v2298 = vpop.f32.mrf.mxu0
      %2299 = vmatprep.mubr.f32.mxu0 0.0
      %2300 = vmatmul.mubr.f32.gmra.mxu0 %v1023
      %v2301 = vpop.f32.mrf.mxu0
      %v2302 = vadd.f32 %v2077, %v2301
      %v2303 = vpop.f32.mrf.mxu0
      %2304 = vmatprep.mubr.f32.mxu0 0.0
      %2305 = vmatmul.mubr.f32.gmra.mxu0 %v1032
      %v2306 = vpop.f32.mrf.mxu0
      %v2307 = vadd.f32 %v2082, %v2306
      %v2308 = vpop.f32.mrf.mxu0
      %2309 = vmatprep.mubr.f32.mxu0 0.0
      %2310 = vmatmul.mubr.f32.gmra.mxu0 %v1041
      %v2311 = vpop.f32.mrf.mxu0
      %v2312 = vadd.f32 %v2087, %v2311
      %v2313 = vpop.f32.mrf.mxu0
      %2314 = vmatprep.mubr.f32.mxu0 0.0
      %2315 = vmatmul.mubr.f32.gmra.mxu0 %v1050
      %v2316 = vpop.f32.mrf.mxu0
      %v2317 = vadd.f32 %v2092, %v2316
      %v2318 = vpop.f32.mrf.mxu0
      %2319 = vdwg.mxu0
      %2320 = vst [vmem:[%s180] sm:$0xff] %v2162
      %2321 = vst [vmem:[%s180 + $0x8] sm:$0xff] %v2167
      %2322 = vst [vmem:[%s180 + $0x10] sm:$0xff] %v2172
      %2323 = vst [vmem:[%s180 + $0x18] sm:$0xff] %v2177
      %2324 = vst [vmem:[%s180 + $0x20] sm:$0xff] %v2182
      %2325 = vst [vmem:[%s180 + $0x28] sm:$0xff] %v2187
      %2326 = vst [vmem:[%s180 + $0x30] sm:$0xff] %v2192
      %2327 = vst [vmem:[%s180 + $0x38] sm:$0xff] %v2197
      %2328 = vst [vmem:[%s180 + $0x40] sm:$0xff] %v2202
      %2329 = vst [vmem:[%s180 + $0x48] sm:$0xff] %v2207
      %2330 = vst [vmem:[%s180 + $0x50] sm:$0xff] %v2212
      %2331 = vst [vmem:[%s180 + $0x58] sm:$0xff] %v2217
      %2332 = vst [vmem:[%s180 + $0x60] sm:$0xff] %v2222
      %2333 = vst [vmem:[%s180 + $0x68] sm:$0xff] %v2227
      %2334 = vst [vmem:[%s180 + $0x70] sm:$0xff] %v2232
      %2335 = vst [vmem:[%s180 + $0x78] sm:$0xff] %v2237
      %2336 = vst [vmem:[%s180 + $0x80] sm:$0xff] %v2242
      %2337 = vst [vmem:[%s180 + $0x88] sm:$0xff] %v2247
      %2338 = vst [vmem:[%s180 + $0x90] sm:$0xff] %v2252
      %2339 = vst [vmem:[%s180 + $0x98] sm:$0xff] %v2257
      %2340 = vst [vmem:[%s180 + $0xa0] sm:$0xff] %v2262
      %2341 = vst [vmem:[%s180 + $0xa8] sm:$0xff] %v2267
      %2342 = vst [vmem:[%s180 + $0xb0] sm:$0xff] %v2272
      %2343 = vst [vmem:[%s180 + $0xb8] sm:$0xff] %v2277
      %2344 = vst [vmem:[%s180 + $0xc0] sm:$0xff] %v2282
      %2345 = vst [vmem:[%s180 + $0xc8] sm:$0xff] %v2287
      %2346 = vst [vmem:[%s180 + $0xd0] sm:$0xff] %v2292
      %2347 = vst [vmem:[%s180 + $0xd8] sm:$0xff] %v2297
      %2348 = vst [vmem:[%s180 + $0xe0] sm:$0xff] %v2302
      %2349 = vst [vmem:[%s180 + $0xe8] sm:$0xff] %v2307
      %2350 = vst [vmem:[%s180 + $0xf0] sm:$0xff] %v2312
      %2351 = vst [vmem:[%s180 + $0xf8] sm:$0xff] %v2317
      %p2352 = scmp.lt.s32.totalorder %s17, 1
      %s2353 = scalar_select %p2352, %s17, 1
      %p2354 = scmp.lt.s32.totalorder %s18, 0
      %s2355 = scalar_select %p2354, %s18, 0
      %s2356 = smul.addr %s2353, 32
      %s2357 = sadd.s32 %s2355, %s2356
      %s2358 = smul.addr %s2357, 8
      %s2359 = scalar_lea.vmem %s2, %s2358
      // Predicated region
      $region33: #{new_complex_conv.1} parent=27 // pred_check
        %p2360 = pneg %p97
      $region34: #{new_complex_conv.1} parent=27 // pred_check_branch
        %2362 = sbr.rel (%p2360) target = $region36
      $region35: #{new_complex_conv.1} parent=27 // pred_region
        _
      $region36: #{new_complex_conv.1} parent=27 // pred_fallthru
        _
    $region28: #{new_complex_conv.1} parent=5 // pred_fallthru
      _
    %p2363 = scmp.le.s32.totalorder 2, %s8
    // Predicated region
    $region37: #{new_complex_conv.1} parent=5 // pred_check
      %p2364 = pneg %p2363
    $region38: #{new_complex_conv.1} parent=5 // pred_check_branch
      %2366 = sbr.rel (%p2364) target = $region40
    $region39: #{new_complex_conv.1} parent=5 // pred_region
      %s2367 = ssub.s32 %s8, 2
      // Predicated region
      $region41: #{new_complex_conv.1} parent=39 // pred_check
        %p2368 = pneg %p103
      $region42: #{new_complex_conv.1} parent=39 // pred_check_branch
        %2370 = sbr.rel (%p2368) target = $region44
      $region43: #{new_complex_conv.1} parent=39 // pred_region
        %p2371 = scmp.lt.s32.totalorder %s19, 1
        %s2372 = scalar_select %p2371, %s19, 1
        %p2373 = scmp.lt.s32.totalorder %s20, 0
        %s2374 = scalar_select %p2373, %s20, 0
        %s2375 = smul.addr %s2372, 32
        %s2376 = sadd.s32 %s2374, %s2375
        %s2377 = smul.addr %s2376, 8
        %s2378 = scalar_lea.vmem %s2, %s2377
      $region44: #{new_complex_conv.1} parent=39 // pred_fallthru
        _
    $region40: #{new_complex_conv.1} parent=5 // pred_fallthru
      _
  $region6: #{new_complex_conv.1} parent=0 // loop_footer
    %s12 = sadd.s32 1, %s8
  $region7: #{new_complex_conv.1} parent=0 // loop_footer_branch
    %7 = sbr.rel target = $region3
  $region8: #{new_complex_conv.1} parent=0 // loop_exit
    _

</llo_original>
